<compile_context>
chip_gen: v5e
topology: v5e:2x2
jax: 0.10.0
libtpu: 0.0.40
codegen_flags: <defaults>
</compile_context>

<pallas_src>
import jax
import jax.numpy as jnp
from jax.experimental import pallas as pl
from jax.experimental.pallas import tpu as pltpu

BN_EPS = 1e-5    # nn.BatchNorm1d default eps (eval mode, running stats)
LN_EPS = 1e-5    # nn.LayerNorm default eps
L2_EPS = 1e-12   # F.normalize default eps


# ----------------------- shared packed math (kernel + matched reference) -----

def _packed_forward(xc, xf, W1, W2, W3, FW1, FW2, rows, inv_temp):
    """Packed user+item forward.

    xc : (rows, 2E)  = [u_collab | i_collab]        (bf16)
    xf : (rows, Fu+Fi) = [user_features | item_features] (bf16)
    W1/W2/W3 : block-diagonal content-tower weights (BN folded), bf16
    FW1/FW2  : packed fusion weights, bf16
    rows : (8, row_w) f32 packed row params:
           0: b1  1: b2  2: b3  3: fusion b1  4: fusion b2  5: ln_g  6: ln_b
    Returns (rows, 1) f32 similarities (already scaled by 1/temperature).
    """
    f32 = jnp.float32
    h1n, h2n, e2 = W1.shape[1], W2.shape[1], W3.shape[1]
    e = e2 // 2

    b1, b2, b3 = rows[0:1, :h1n], rows[1:2, :h2n], rows[2:3, :e2]
    fb1, fb2 = rows[3:4, :e2], rows[4:5, :e2]
    ln_g, ln_b = rows[5:6, :e2], rows[6:7, :e2]

    # Content towers (both at once, block-diagonal). Dropout = identity (eval).
    h = jnp.dot(xf, W1, preferred_element_type=f32) + b1
    h = jnp.maximum(h, 0.0)
    h = jnp.dot(h.astype(W2.dtype), W2, preferred_element_type=f32) + b2
    h = jnp.maximum(h, 0.0)
    content = jnp.dot(h.astype(W3.dtype), W3, preferred_element_type=f32) + b3

    # Fusion (both towers at once): fin = [u_collab | i_collab | u_content | i_content]
    fin = jnp.concatenate([xc, content.astype(xc.dtype)], axis=1)
    h = jnp.dot(fin, FW1, preferred_element_type=f32) + fb1
    h = jnp.maximum(h, 0.0)
    h = jnp.dot(h.astype(FW2.dtype), FW2, preferred_element_type=f32) + fb2

    # Per-half LayerNorm (user half / item half).
    def layernorm(x, g, b):
        mu = jnp.mean(x, axis=-1, keepdims=True)
        var = jnp.mean(jnp.square(x - mu), axis=-1, keepdims=True)
        return (x - mu) * jax.lax.rsqrt(var + LN_EPS) * g + b

    u = layernorm(h[:, :e], ln_g[:, :e], ln_b[:, :e])
    i = layernorm(h[:, e:], ln_g[:, e:], ln_b[:, e:])

    # Reduction-first epilogue: dot / squared-norms on the lane axis, one rsqrt.
    # sim = <u,i> / (max(|u|,eps) * max(|i|,eps)) * (1/temperature)
    d = jnp.sum(u * i, axis=-1, keepdims=True)
    nu2 = jnp.sum(u * u, axis=-1, keepdims=True)
    ni2 = jnp.sum(i * i, axis=-1, keepdims=True)
    denom2 = jnp.maximum(nu2, L2_EPS * L2_EPS) * jnp.maximum(ni2, L2_EPS * L2_EPS)
    return d * inv_temp * jax.lax.rsqrt(denom2)


# --------------------------------- kernel -----------------------------------

def two_tower_kernel(xc_ref, xf_ref, W1, W2, W3, FW1, FW2, rows_ref,
                     inv_temp_ref, out_ref):
    sim = _packed_forward(xc_ref[...], xf_ref[...], W1[...], W2[...], W3[...],
                          FW1[...], FW2[...], rows_ref[...], inv_temp_ref[0])
    # Only the final (TILE_B, 1) column is transposed -> lane-dense (1, TILE_B)
    # unmasked store.
    out_ref[...] = jnp.transpose(sim)


# --------------------------- params (PyTorch-like) ---------------------------

def make_params(key, num_users, num_items, fu, fi, e, hidden):
    h1, h2 = hidden
    ks = iter(jax.random.split(key, 24))

    def xavier(k, fan_in, fan_out):
        std = (2.0 / (fan_in + fan_out)) ** 0.5
        return (std * jax.random.normal(k, (fan_in, fan_out))).astype(jnp.float32)

    def bn(k, dim):                       # eval-mode running stats (randomized)
        k1, k2, k3, k4 = jax.random.split(k, 4)
        return {"gamma": (1.0 + 0.1 * jax.random.normal(k1, (dim,))).astype(jnp.float32),
                "beta": (0.05 * jax.random.normal(k2, (dim,))).astype(jnp.float32),
                "mean": (0.1 * jax.random.normal(k3, (dim,))).astype(jnp.float32),
                "var": jax.random.uniform(k4, (dim,), minval=0.5, maxval=1.5,
                                          dtype=jnp.float32)}

    def tower(fin):
        return {"W1": xavier(next(ks), fin, h1), "b1": jnp.zeros((h1,), jnp.float32),
                "bn1": bn(next(ks), h1),
                "W2": xavier(next(ks), h1, h2), "b2": jnp.zeros((h2,), jnp.float32),
                "bn2": bn(next(ks), h2),
                "W3": xavier(next(ks), h2, e), "b3": jnp.zeros((e,), jnp.float32)}

    def fusion():
        return {"W1": xavier(next(ks), 2 * e, e), "b1": jnp.zeros((e,), jnp.float32),
                "W2": xavier(next(ks), e, e), "b2": jnp.zeros((e,), jnp.float32),
                "ln_g": jnp.ones((e,), jnp.float32), "ln_b": jnp.zeros((e,), jnp.float32)}

    return {"user_emb_table": xavier(next(ks), num_users, e),
            "item_emb_table": xavier(next(ks), num_items, e),
            "user_tower": tower(fu), "item_tower": tower(fi),
            "user_fusion": fusion(), "item_fusion": fusion(),
            "temperature": jnp.full((1,), 0.1, jnp.float32)}


# ------ host-side prep: fold BN, block-diag pack user+item, pack rows, cast ---

def prepare_kernel_params(params, compute_dtype=jnp.bfloat16):
    ut, it = params["user_tower"], params["item_tower"]
    ufz, ifz = params["user_fusion"], params["item_fusion"]
    e = params["user_emb_table"].shape[1]

    def fold(W, b, bn):     # Linear + eval-BatchNorm  ->  Linear'
        scale = bn["gamma"] * jax.lax.rsqrt(bn["var"] + BN_EPS)
        return W * scale[None, :], (b - bn["mean"]) * scale + bn["beta"]

    def blockdiag(A, B):
        m1, n1 = A.shape
        m2, n2 = B.shape
        out = jnp.zeros((m1 + m2, n1 + n2), jnp.float32)
        out = out.at[:m1, :n1].set(A)
        out = out.at[m1:, n1:].set(B)
        return out

    uW1, ub1 = fold(ut["W1"], ut["b1"], ut["bn1"])
    iW1, ib1 = fold(it["W1"], it["b1"], it["bn1"])
    uW2, ub2 = fold(ut["W2"], ut["b2"], ut["bn2"])
    iW2, ib2 = fold(it["W2"], it["b2"], it["bn2"])

    W1 = blockdiag(uW1, iW1)                 # (Fu+Fi, 2*h1)
    W2 = blockdiag(uW2, iW2)                 # (2*h1, 2*h2)
    W3 = blockdiag(ut["W3"], it["W3"])       # (2*h2, 2*E)
    b1 = jnp.concatenate([ub1, ib1])
    b2 = jnp.concatenate([ub2, ib2])
    b3 = jnp.concatenate([ut["b3"], it["b3"]])

    # Packed fusion W1: kernel input is [u_collab | i_collab | u_content | i_content].
    uFW1, iFW1 = ufz["W1"], ifz["W1"]        # each (2E, E): rows 0:E collab, E:2E content
    FW1 = jnp.zeros((4 * e, 2 * e), jnp.float32)
    FW1 = FW1.at[0:e, 0:e].set(uFW1[:e])             # u_collab  -> user cols
    FW1 = FW1.at[e:2 * e, e:2 * e].set(iFW1[:e])     # i_collab  -> item cols
    FW1 = FW1.at[2 * e:3 * e, 0:e].set(uFW1[e:])     # u_content -> user cols
    FW1 = FW1.at[3 * e:4 * e, e:2 * e].set(iFW1[e:]) # i_content -> item cols
    fb1 = jnp.concatenate([ufz["b1"], ifz["b1"]])
    FW2 = blockdiag(ufz["W2"], ifz["W2"])            # (2E, 2E)
    fb2 = jnp.concatenate([ufz["b2"], ifz["b2"]])
    ln_g = jnp.concatenate([ufz["ln_g"], ifz["ln_g"]])
    ln_b = jnp.concatenate([ufz["ln_b"], ifz["ln_b"]])

    # Pack the 7 tiny row parameters into one (8, row_w) f32 tile.
    vecs = [b1, b2, b3, fb1, fb2, ln_g, ln_b]
    row_w = ((max(int(v.shape[0]) for v in vecs) + 127) // 128) * 128

    def padrow(v):
        return jnp.pad(v.astype(jnp.float32), (0, row_w - v.shape[0]))

    rows = jnp.stack([padrow(v) for v in vecs] + [jnp.zeros((row_w,), jnp.float32)])

    weights = [W1.astype(compute_dtype), W2.astype(compute_dtype),
               W3.astype(compute_dtype), FW1.astype(compute_dtype),
               FW2.astype(compute_dtype)]
    inv_temp = (1.0 / params["temperature"]).astype(jnp.float32)  # multiply, not divide
    return weights, rows, inv_temp


# --------------------------------- wrapper -----------------------------------

def _pick_tile_b(batch, desired):
    # Large tiles amortize per-grid-step overhead; cap so the "parallel" grid
    # axis keeps >= 2 tiles (v7x has 2 TensorCores per chip).
    desired = max(128, (desired // 128) * 128)
    half = max(128, ((pl.cdiv(batch, 2) + 127) // 128) * 128)
    return min(desired, half)


def forward(params, user_ids, item_ids, user_features, item_features,
            *, tile_b=512, compute_dtype=jnp.bfloat16):
    weights, rows, inv_temp = prepare_kernel_params(params, compute_dtype)

    # TODO(synk): for production-size embedding tables, move these gathers into
    # the kernel via PrefetchScalarGridSpec(num_scalar_prefetch=2) + pl.Element
    # row-gather BlockSpecs on tables kept in memory_space=pl.ANY.
    u_collab = jnp.take(params["user_emb_table"], user_ids, axis=0)
    i_collab = jnp.take(params["item_emb_table"], item_ids, axis=0)

    # Lane-concat user|item so one block-diagonal matmul chain serves both towers.
    # Activations feed bf16 matmuls only -> ship them as bf16 (halves DMA bytes).
    xc = jnp.concatenate([u_collab, i_collab], axis=1).astype(compute_dtype)
    xf = jnp.concatenate([user_features, item_features], axis=1).astype(compute_dtype)

    b = user_ids.shape[0]
    tile_b = _pick_tile_b(b, tile_b)
    n_tiles = pl.cdiv(b, tile_b)
    bp = n_tiles * tile_b

    # TODO(synk): for large batches, handle the ragged last tile with a masked
    # store instead of a host-side jnp.pad (extra HBM read+write of activations).
    def pad(x):
        return jnp.pad(x, ((0, bp - b), (0, 0))) if bp != b else x

    xc, xf = pad(xc), pad(xf)

    # Activations: tiled over the batch grid (double-buffered by Pallas).
    act_specs = [pl.BlockSpec((tile_b, xc.shape[1]), lambda i: (i, 0)),
                 pl.BlockSpec((tile_b, xf.shape[1]), lambda i: (i, 0))]
    # Weights / packed rows: full-array blocks with constant index_map
    # -> fetched once, VMEM-resident across all grid iterations.
    wt_specs = [pl.BlockSpec(w.shape, lambda i: (0, 0)) for w in weights]
    wt_specs.append(pl.BlockSpec(rows.shape, lambda i: (0, 0)))
    smem_spec = pl.BlockSpec(memory_space=pltpu.MemorySpace.SMEM)  # 1/temperature

    out = pl.pallas_call(
        two_tower_kernel,
        out_shape=jax.ShapeDtypeStruct((1, bp), jnp.float32),      # lane-dense output
        grid=(n_tiles,),
        in_specs=act_specs + wt_specs + [smem_spec],
        out_specs=pl.BlockSpec((1, tile_b), lambda i: (0, i)),
        compiler_params=pltpu.CompilerParams(
            dimension_semantics=("parallel",),                     # v7x: shard over 2 TCs
            vmem_limit_bytes=32 * 1024 * 1024),
    )(xc, xf, *weights, rows, inv_temp)

    return out[0, :b]


# ------------------------------ references -----------------------------------

def matched_reference(weights, rows, inv_temp, xc, xf):
    """Same packed / folded-BN / bf16-matmul math as the kernel, in plain JAX."""
    sim = _packed_forward(xc, xf, *weights, rows, inv_temp[0])
    return sim[:, 0]


def reference_forward(params, user_ids, item_ids, user_features, item_features):
    """Exact f32 PyTorch eval-mode semantics (unfolded BN, F.normalize, /temp)."""
    def bn(h, s):
        return (h - s["mean"]) / jnp.sqrt(s["var"] + BN_EPS) * s["gamma"] + s["beta"]

    def tower(x, t):
        h = jnp.maximum(bn(x @ t["W1"] + t["b1"], t["bn1"]), 0.0)
        h = jnp.maximum(bn(h @ t["W2"] + t["b2"], t["bn2"]), 0.0)
        return h @ t["W3"] + t["b3"]

    def fusion(collab, content, f):
        h = jnp.maximum(jnp.concatenate([collab, content], axis=1) @ f["W1"] + f["b1"], 0.0)
        h = h @ f["W2"] + f["b2"]
        mu = h.mean(-1, keepdims=True)
        var = jnp.square(h - mu).mean(-1, keepdims=True)
        return (h - mu) / jnp.sqrt(var + LN_EPS) * f["ln_g"] + f["ln_b"]

    def l2n(x):
        n = jnp.sqrt(jnp.sum(x * x, axis=-1, keepdims=True))
        return x / jnp.maximum(n, L2_EPS)

    uc = jnp.take(params["user_emb_table"], user_ids, axis=0)
    ic = jnp.take(params["item_emb_table"], item_ids, axis=0)
    u = l2n(fusion(uc, tower(user_features, params["user_tower"]), params["user_fusion"]))
    i = l2n(fusion(ic, tower(item_features, params["item_tower"]), params["item_fusion"]))
    return jnp.sum(u * i, axis=-1) / params["temperature"][0]


# ---------------------------------- main --------------------------------------

if __name__ == "__main__":
    B = 200                      # padded to 256 -> grid of two 128-row tiles
    NUM_USERS, NUM_ITEMS = 50, 80
    FU, FI, E = 16, 24, 32
    HIDDEN = (64, 48)

    key = jax.random.PRNGKey(0)
    kp, ku, ki, kuf, kif = jax.random.split(key, 5)
    params = make_params(kp, NUM_USERS, NUM_ITEMS, FU, FI, E, HIDDEN)
    user_ids = jax.random.randint(ku, (B,), 0, NUM_USERS)
    item_ids = jax.random.randint(ki, (B,), 0, NUM_ITEMS)
    user_features = jax.random.normal(kuf, (B, FU), dtype=jnp.float32)
    item_features = jax.random.normal(kif, (B, FI), dtype=jnp.float32)

    out = forward(params, user_ids, item_ids, user_features, item_features)
    out = jax.block_until_ready(out)
    assert out.shape == (B,), out.shape
    assert bool(jnp.all(jnp.isfinite(out)))

    # 1) Tight check against an identical-math (packed, folded-BN, bf16 matmul) reference.
    weights, rows, inv_temp = prepare_kernel_params(params)
    u_collab = jnp.take(params["user_emb_table"], user_ids, axis=0)
    i_collab = jnp.take(params["item_emb_table"], item_ids, axis=0)
    xc = jnp.concatenate([u_collab, i_collab], axis=1).astype(jnp.bfloat16)
    xf = jnp.concatenate([user_features, item_features], axis=1).astype(jnp.bfloat16)
    matched = matched_reference(weights, rows, inv_temp, xc, xf)
    assert jnp.allclose(out, matched, atol=5e-3, rtol=5e-3), \
        float(jnp.max(jnp.abs(out - matched)))

    # 2) Semantics check against the exact f32 PyTorch-equivalent reference
    #    (tolerance accounts for bf16 matmul operands).
    ref = reference_forward(params, user_ids, item_ids, user_features, item_features)
    rel_err = float(jnp.linalg.norm(out - ref) / jnp.linalg.norm(ref))
    assert rel_err < 5e-2, rel_err

    print("KERNEL_OK")
</pallas_src>

<mosaic_0001>
module attributes {stable_mosaic.version = 11 : i64} {
  func.func @two_tower_kernel(%arg0: i32, %arg1: memref<128x64xbf16, #tpu.memory_space<vmem>>, %arg2: memref<128x40xbf16, #tpu.memory_space<vmem>>, %arg3: memref<40x128xbf16, #tpu.memory_space<vmem>>, %arg4: memref<128x96xbf16, #tpu.memory_space<vmem>>, %arg5: memref<96x64xbf16, #tpu.memory_space<vmem>>, %arg6: memref<128x64xbf16, #tpu.memory_space<vmem>>, %arg7: memref<64x64xbf16, #tpu.memory_space<vmem>>, %arg8: memref<8x128xf32, #tpu.memory_space<vmem>>, %arg9: memref<1xf32, #tpu.memory_space<smem>>, %arg10: memref<1x128xf32, #tpu.memory_space<vmem>>) attributes {dimension_semantics = [#tpu.dimension_semantics<parallel>], iteration_bounds = array<i64: 2>, scalar_prefetch = 0 : i64, scratch_operands = 0 : i64, tpu.core_type = #tpu.core_type<tc>, window_params = [{transform_indices = @transform_0, window_bounds = array<i64: 128, 64>}, {transform_indices = @transform_1, window_bounds = array<i64: 128, 40>}, {pipeline_mode = #tpu.pipeline_mode<synchronous>, transform_indices = @transform_2, window_bounds = array<i64: 40, 128>}, {pipeline_mode = #tpu.pipeline_mode<synchronous>, transform_indices = @transform_3, window_bounds = array<i64: 128, 96>}, {pipeline_mode = #tpu.pipeline_mode<synchronous>, transform_indices = @transform_4, window_bounds = array<i64: 96, 64>}, {pipeline_mode = #tpu.pipeline_mode<synchronous>, transform_indices = @transform_5, window_bounds = array<i64: 128, 64>}, {pipeline_mode = #tpu.pipeline_mode<synchronous>, transform_indices = @transform_6, window_bounds = array<i64: 64, 64>}, {pipeline_mode = #tpu.pipeline_mode<synchronous>, transform_indices = @transform_7, window_bounds = array<i64: 8, 128>}, {transform_indices = @transform_8, window_bounds = array<i64: 1>}, {transform_indices = @transform_9, window_bounds = array<i64: 1, 128>}]} {
    %c0 = arith.constant 0 : index
    %c0_0 = arith.constant 0 : index
    %0 = vector.load %arg1[%c0, %c0_0] : memref<128x64xbf16, #tpu.memory_space<vmem>>, vector<128x64xbf16>
    %c0_1 = arith.constant 0 : index
    %c0_2 = arith.constant 0 : index
    %1 = vector.load %arg2[%c0_1, %c0_2] : memref<128x40xbf16, #tpu.memory_space<vmem>>, vector<128x40xbf16>
    %c0_3 = arith.constant 0 : index
    %c0_4 = arith.constant 0 : index
    %2 = vector.load %arg3[%c0_3, %c0_4] : memref<40x128xbf16, #tpu.memory_space<vmem>>, vector<40x128xbf16>
    %c0_5 = arith.constant 0 : index
    %c0_6 = arith.constant 0 : index
    %3 = vector.load %arg4[%c0_5, %c0_6] : memref<128x96xbf16, #tpu.memory_space<vmem>>, vector<128x96xbf16>
    %c0_7 = arith.constant 0 : index
    %c0_8 = arith.constant 0 : index
    %4 = vector.load %arg5[%c0_7, %c0_8] : memref<96x64xbf16, #tpu.memory_space<vmem>>, vector<96x64xbf16>
    %c0_9 = arith.constant 0 : index
    %c0_10 = arith.constant 0 : index
    %5 = vector.load %arg6[%c0_9, %c0_10] : memref<128x64xbf16, #tpu.memory_space<vmem>>, vector<128x64xbf16>
    %c0_11 = arith.constant 0 : index
    %c0_12 = arith.constant 0 : index
    %6 = vector.load %arg7[%c0_11, %c0_12] : memref<64x64xbf16, #tpu.memory_space<vmem>>, vector<64x64xbf16>
    %c0_13 = arith.constant 0 : index
    %c0_14 = arith.constant 0 : index
    %7 = vector.load %arg8[%c0_13, %c0_14] : memref<8x128xf32, #tpu.memory_space<vmem>>, vector<8x128xf32>
    %c0_15 = arith.constant 0 : index
    %8 = memref.load %arg9[%c0_15] : memref<1xf32, #tpu.memory_space<smem>>
    %9 = vector.extract_strided_slice %7 {offsets = [0, 0], sizes = [1, 128], strides = [1, 1]} : vector<8x128xf32> to vector<1x128xf32>
    %10 = vector.extract_strided_slice %7 {offsets = [1, 0], sizes = [1, 96], strides = [1, 1]} : vector<8x128xf32> to vector<1x96xf32>
    %11 = vector.extract_strided_slice %7 {offsets = [2, 0], sizes = [1, 64], strides = [1, 1]} : vector<8x128xf32> to vector<1x64xf32>
    %12 = vector.extract_strided_slice %7 {offsets = [3, 0], sizes = [1, 64], strides = [1, 1]} : vector<8x128xf32> to vector<1x64xf32>
    %13 = vector.extract_strided_slice %7 {offsets = [4, 0], sizes = [1, 64], strides = [1, 1]} : vector<8x128xf32> to vector<1x64xf32>
    %14 = vector.extract_strided_slice %7 {offsets = [5, 0], sizes = [1, 64], strides = [1, 1]} : vector<8x128xf32> to vector<1x64xf32>
    %15 = vector.extract_strided_slice %7 {offsets = [6, 0], sizes = [1, 64], strides = [1, 1]} : vector<8x128xf32> to vector<1x64xf32>
    %cst = arith.constant dense<0.000000e+00> : vector<128x128xf32>
    %16 = tpu.matmul %1, %2, %cst {dimension_numbers = #tpu.dot_dimension_numbers<[1], [0], [0], [1], [0, 0, 1, 1], [], []>} : vector<128x40xbf16>, vector<40x128xbf16>, vector<128x128xf32> -> vector<128x128xf32>
    %17 = vector.broadcast %9 : vector<1x128xf32> to vector<128x128xf32>
    %18 = arith.addf %16, %17 : vector<128x128xf32>
    %cst_16 = arith.constant 0.000000e+00 : f32
    %19 = vector.broadcast %cst_16 : f32 to vector<128x128xf32>
    %20 = arith.maximumf %18, %19 : vector<128x128xf32>
    %21 = arith.truncf %20 : vector<128x128xf32> to vector<128x128xbf16>
    %cst_17 = arith.constant dense<0.000000e+00> : vector<128x96xf32>
    %22 = tpu.matmul %21, %3, %cst_17 {dimension_numbers = #tpu.dot_dimension_numbers<[1], [0], [0], [1], [0, 0, 1, 1], [], []>} : vector<128x128xbf16>, vector<128x96xbf16>, vector<128x96xf32> -> vector<128x96xf32>
    %23 = vector.broadcast %10 : vector<1x96xf32> to vector<128x96xf32>
    %24 = arith.addf %22, %23 : vector<128x96xf32>
    %cst_18 = arith.constant 0.000000e+00 : f32
    %25 = vector.broadcast %cst_18 : f32 to vector<128x96xf32>
    %26 = arith.maximumf %24, %25 : vector<128x96xf32>
    %27 = arith.truncf %26 : vector<128x96xf32> to vector<128x96xbf16>
    %cst_19 = arith.constant dense<0.000000e+00> : vector<128x64xf32>
    %28 = tpu.matmul %27, %4, %cst_19 {dimension_numbers = #tpu.dot_dimension_numbers<[1], [0], [0], [1], [0, 0, 1, 1], [], []>} : vector<128x96xbf16>, vector<96x64xbf16>, vector<128x64xf32> -> vector<128x64xf32>
    %29 = vector.broadcast %11 : vector<1x64xf32> to vector<128x64xf32>
    %30 = arith.addf %28, %29 : vector<128x64xf32>
    %31 = arith.truncf %30 : vector<128x64xf32> to vector<128x64xbf16>
    %32 = tpu.concatenate %0, %31 in 1 : vector<128x64xbf16>, vector<128x64xbf16> -> vector<128x128xbf16>
    %cst_20 = arith.constant dense<0.000000e+00> : vector<128x64xf32>
    %33 = tpu.matmul %32, %5, %cst_20 {dimension_numbers = #tpu.dot_dimension_numbers<[1], [0], [0], [1], [0, 0, 1, 1], [], []>} : vector<128x128xbf16>, vector<128x64xbf16>, vector<128x64xf32> -> vector<128x64xf32>
    %34 = vector.broadcast %12 : vector<1x64xf32> to vector<128x64xf32>
    %35 = arith.addf %33, %34 : vector<128x64xf32>
    %cst_21 = arith.constant 0.000000e+00 : f32
    %36 = vector.broadcast %cst_21 : f32 to vector<128x64xf32>
    %37 = arith.maximumf %35, %36 : vector<128x64xf32>
    %38 = arith.truncf %37 : vector<128x64xf32> to vector<128x64xbf16>
    %cst_22 = arith.constant dense<0.000000e+00> : vector<128x64xf32>
    %39 = tpu.matmul %38, %6, %cst_22 {dimension_numbers = #tpu.dot_dimension_numbers<[1], [0], [0], [1], [0, 0, 1, 1], [], []>} : vector<128x64xbf16>, vector<64x64xbf16>, vector<128x64xf32> -> vector<128x64xf32>
    %40 = vector.broadcast %13 : vector<1x64xf32> to vector<128x64xf32>
    %41 = arith.addf %39, %40 : vector<128x64xf32>
    %42 = vector.extract_strided_slice %41 {offsets = [0, 0], sizes = [128, 32], strides = [1, 1]} : vector<128x64xf32> to vector<128x32xf32>
    %43 = vector.extract_strided_slice %14 {offsets = [0, 0], sizes = [1, 32], strides = [1, 1]} : vector<1x64xf32> to vector<1x32xf32>
    %44 = vector.extract_strided_slice %15 {offsets = [0, 0], sizes = [1, 32], strides = [1, 1]} : vector<1x64xf32> to vector<1x32xf32>
    %cst_23 = arith.constant dense<0.000000e+00> : vector<128xf32>
    %45 = vector.multi_reduction <add>, %42, %cst_23 [1] : vector<128x32xf32> to vector<128xf32>
    %46 = vector.shape_cast %45 : vector<128xf32> to vector<128x1xf32>
    %cst_24 = arith.constant 3.200000e+01 : f32
    %47 = vector.broadcast %cst_24 : f32 to vector<128x1xf32>
    %48 = arith.divf %46, %47 : vector<128x1xf32>
    %49 = vector.broadcast %48 : vector<128x1xf32> to vector<128x32xf32>
    %50 = arith.subf %42, %49 : vector<128x32xf32>
    %51 = arith.mulf %50, %50 : vector<128x32xf32>
    %cst_25 = arith.constant dense<0.000000e+00> : vector<128xf32>
    %52 = vector.multi_reduction <add>, %51, %cst_25 [1] : vector<128x32xf32> to vector<128xf32>
    %53 = vector.shape_cast %52 : vector<128xf32> to vector<128x1xf32>
    %cst_26 = arith.constant 3.200000e+01 : f32
    %54 = vector.broadcast %cst_26 : f32 to vector<128x1xf32>
    %55 = arith.divf %53, %54 : vector<128x1xf32>
    %56 = vector.broadcast %48 : vector<128x1xf32> to vector<128x32xf32>
    %57 = arith.subf %42, %56 : vector<128x32xf32>
    %cst_27 = arith.constant 9.99999974E-6 : f32
    %58 = vector.broadcast %cst_27 : f32 to vector<128x1xf32>
    %59 = arith.addf %55, %58 : vector<128x1xf32>
    %60 = math.rsqrt %59 : vector<128x1xf32>
    %61 = vector.broadcast %60 : vector<128x1xf32> to vector<128x32xf32>
    %62 = arith.mulf %57, %61 : vector<128x32xf32>
    %63 = vector.broadcast %43 : vector<1x32xf32> to vector<128x32xf32>
    %64 = arith.mulf %62, %63 : vector<128x32xf32>
    %65 = vector.broadcast %44 : vector<1x32xf32> to vector<128x32xf32>
    %66 = arith.addf %64, %65 : vector<128x32xf32>
    %67 = vector.extract_strided_slice %41 {offsets = [0, 32], sizes = [128, 32], strides = [1, 1]} : vector<128x64xf32> to vector<128x32xf32>
    %68 = vector.extract_strided_slice %14 {offsets = [0, 32], sizes = [1, 32], strides = [1, 1]} : vector<1x64xf32> to vector<1x32xf32>
    %69 = vector.extract_strided_slice %15 {offsets = [0, 32], sizes = [1, 32], strides = [1, 1]} : vector<1x64xf32> to vector<1x32xf32>
    %cst_28 = arith.constant dense<0.000000e+00> : vector<128xf32>
    %70 = vector.multi_reduction <add>, %67, %cst_28 [1] : vector<128x32xf32> to vector<128xf32>
    %71 = vector.shape_cast %70 : vector<128xf32> to vector<128x1xf32>
    %cst_29 = arith.constant 3.200000e+01 : f32
    %72 = vector.broadcast %cst_29 : f32 to vector<128x1xf32>
    %73 = arith.divf %71, %72 : vector<128x1xf32>
    %74 = vector.broadcast %73 : vector<128x1xf32> to vector<128x32xf32>
    %75 = arith.subf %67, %74 : vector<128x32xf32>
    %76 = arith.mulf %75, %75 : vector<128x32xf32>
    %cst_30 = arith.constant dense<0.000000e+00> : vector<128xf32>
    %77 = vector.multi_reduction <add>, %76, %cst_30 [1] : vector<128x32xf32> to vector<128xf32>
    %78 = vector.shape_cast %77 : vector<128xf32> to vector<128x1xf32>
    %cst_31 = arith.constant 3.200000e+01 : f32
    %79 = vector.broadcast %cst_31 : f32 to vector<128x1xf32>
    %80 = arith.divf %78, %79 : vector<128x1xf32>
    %81 = vector.broadcast %73 : vector<128x1xf32> to vector<128x32xf32>
    %82 = arith.subf %67, %81 : vector<128x32xf32>
    %cst_32 = arith.constant 9.99999974E-6 : f32
    %83 = vector.broadcast %cst_32 : f32 to vector<128x1xf32>
    %84 = arith.addf %80, %83 : vector<128x1xf32>
    %85 = math.rsqrt %84 : vector<128x1xf32>
    %86 = vector.broadcast %85 : vector<128x1xf32> to vector<128x32xf32>
    %87 = arith.mulf %82, %86 : vector<128x32xf32>
    %88 = vector.broadcast %68 : vector<1x32xf32> to vector<128x32xf32>
    %89 = arith.mulf %87, %88 : vector<128x32xf32>
    %90 = vector.broadcast %69 : vector<1x32xf32> to vector<128x32xf32>
    %91 = arith.addf %89, %90 : vector<128x32xf32>
    %92 = arith.mulf %66, %91 : vector<128x32xf32>
    %cst_33 = arith.constant dense<0.000000e+00> : vector<128xf32>
    %93 = vector.multi_reduction <add>, %92, %cst_33 [1] : vector<128x32xf32> to vector<128xf32>
    %94 = vector.shape_cast %93 : vector<128xf32> to vector<128x1xf32>
    %95 = arith.mulf %66, %66 : vector<128x32xf32>
    %cst_34 = arith.constant dense<0.000000e+00> : vector<128xf32>
    %96 = vector.multi_reduction <add>, %95, %cst_34 [1] : vector<128x32xf32> to vector<128xf32>
    %97 = vector.shape_cast %96 : vector<128xf32> to vector<128x1xf32>
    %98 = arith.mulf %91, %91 : vector<128x32xf32>
    %cst_35 = arith.constant dense<0.000000e+00> : vector<128xf32>
    %99 = vector.multi_reduction <add>, %98, %cst_35 [1] : vector<128x32xf32> to vector<128xf32>
    %100 = vector.shape_cast %99 : vector<128xf32> to vector<128x1xf32>
    %cst_36 = arith.constant 1.000000e-24 : f32
    %101 = vector.broadcast %cst_36 : f32 to vector<128x1xf32>
    %102 = arith.maximumf %97, %101 : vector<128x1xf32>
    %cst_37 = arith.constant 1.000000e-24 : f32
    %103 = vector.broadcast %cst_37 : f32 to vector<128x1xf32>
    %104 = arith.maximumf %100, %103 : vector<128x1xf32>
    %105 = arith.mulf %102, %104 : vector<128x1xf32>
    %106 = vector.broadcast %8 : f32 to vector<128x1xf32>
    %107 = arith.mulf %94, %106 : vector<128x1xf32>
    %108 = math.rsqrt %105 : vector<128x1xf32>
    %109 = arith.mulf %107, %108 : vector<128x1xf32>
    %110 = tpu.transpose %109, [1, 0] : vector<128x1xf32> -> vector<1x128xf32>
    %c0_38 = arith.constant 0 : index
    %c0_39 = arith.constant 0 : index
    %111 = vector.load %arg10[%c0_38, %c0_39] : memref<1x128xf32, #tpu.memory_space<vmem>>, vector<1x128xf32>
    tpu.vector_store %arg10[%c0_38, %c0_39], %110 {strides = array<i32>} : memref<1x128xf32, #tpu.memory_space<vmem>>, vector<1x128xf32>,
    return
  }
  func.func @transform_0(%arg0: i32) -> (i32, i32) {
    %c0_i32 = arith.constant 0 : i32
    %c0_i32_0 = arith.constant 0 : i32
    return %arg0, %c0_i32 : i32, i32
  }
  func.func @transform_1(%arg0: i32) -> (i32, i32) {
    %c0_i32 = arith.constant 0 : i32
    %c0_i32_0 = arith.constant 0 : i32
    return %arg0, %c0_i32 : i32, i32
  }
  func.func @transform_2(%arg0: i32) -> (i32, i32) {
    %c0_i32 = arith.constant 0 : i32
    %c0_i32_0 = arith.constant 0 : i32
    %c0_i32_1 = arith.constant 0 : i32
    return %c0_i32, %c0_i32_0 : i32, i32
  }
  func.func @transform_3(%arg0: i32) -> (i32, i32) {
    %c0_i32 = arith.constant 0 : i32
    %c0_i32_0 = arith.constant 0 : i32
    %c0_i32_1 = arith.constant 0 : i32
    return %c0_i32, %c0_i32_0 : i32, i32
  }
  func.func @transform_4(%arg0: i32) -> (i32, i32) {
    %c0_i32 = arith.constant 0 : i32
    %c0_i32_0 = arith.constant 0 : i32
    %c0_i32_1 = arith.constant 0 : i32
    return %c0_i32, %c0_i32_0 : i32, i32
  }
  func.func @transform_5(%arg0: i32) -> (i32, i32) {
    %c0_i32 = arith.constant 0 : i32
    %c0_i32_0 = arith.constant 0 : i32
    %c0_i32_1 = arith.constant 0 : i32
    return %c0_i32, %c0_i32_0 : i32, i32
  }
  func.func @transform_6(%arg0: i32) -> (i32, i32) {
    %c0_i32 = arith.constant 0 : i32
    %c0_i32_0 = arith.constant 0 : i32
    %c0_i32_1 = arith.constant 0 : i32
    return %c0_i32, %c0_i32_0 : i32, i32
  }
  func.func @transform_7(%arg0: i32) -> (i32, i32) {
    %c0_i32 = arith.constant 0 : i32
    %c0_i32_0 = arith.constant 0 : i32
    %c0_i32_1 = arith.constant 0 : i32
    return %c0_i32, %c0_i32_0 : i32, i32
  }
  func.func @transform_8(%arg0: i32) -> i32 {
    %c0_i32 = arith.constant 0 : i32
    %c0_i32_0 = arith.constant 0 : i32
    return %c0_i32 : i32
  }
  func.func @transform_9(%arg0: i32) -> (i32, i32) {
    %c0_i32 = arith.constant 0 : i32
    %c0_i32_0 = arith.constant 0 : i32
    return %c0_i32, %arg0 : i32, i32
  }
}

</mosaic_0001>

<llo_original>
// kernel: tpu_custom_call.1
$region0: #{tpu_custom_call.1}
  #allocation0 [shape = 'u32[]', space=smem, size = 0x4, offset = 0x4, fixed_abs, tag = 'smem constant byte address 0x4 - core index']
  #allocation1 [shape = 'u32[72,128]{1,0:T(1,128)}', space=vmem, size = 0x9000, scoped, tag = 'internal scratch']
  #allocation2 [shape = 'f32[1]{0:T(128)S(6)}', space=smem, size = 0x200, scoped, tag = 'scoped memory for tpu_custom_call.1']
  %s0 = inlined_call_operand.vmem [shape: bf16[256,64], index: 0, kind: input, shape index: {}]
  %s1 = inlined_call_operand.vmem [shape: bf16[256,40], index: 1, kind: input, shape index: {}]
  %s2 = inlined_call_operand.vmem [shape: bf16[40,128], index: 2, kind: input, shape index: {}]
  %s3 = inlined_call_operand.vmem [shape: bf16[128,96], index: 3, kind: input, shape index: {}]
  %s4 = inlined_call_operand.vmem [shape: bf16[96,64], index: 4, kind: input, shape index: {}]
  %s5 = inlined_call_operand.vmem [shape: bf16[128,64], index: 5, kind: input, shape index: {}]
  %s6 = inlined_call_operand.vmem [shape: bf16[64,64], index: 6, kind: input, shape index: {}]
  %s7 = inlined_call_operand.vmem [shape: f32[8,128], index: 7, kind: input, shape index: {}]
  %s8 = inlined_call_operand.<no memory space> [shape: f32[1], index: 8, kind: input, shape index: {}]
  %s9 = inlined_call_operand.hbm [shape: f32[1,256], index: 9, kind: output, shape index: {}]
  %s10 = sld [smem:[#allocation0]]
  $region69: #{tpu_custom_call.1} parent=0
    _
  %s12 = ssub.s32 1, %s10
  %s13 = scalar_select 0, %s12, %s10
  %14 = sst [smem:[#allocation2]] %s8
  $region1: #{tpu_custom_call.1} parent=0
    #allocation3 [shape = 'u8[1024]{0}', space=vmem, size = 0x400, scoped, tag = 'output window, operand 0']
    #allocation4 [shape = 's32[2]{0}', space=sflag, size = 0x8, scoped, tag = 'scoped memory for tpu_custom_call.1']
    %15 = vsyncpa [#allocation4], 0
    %s16 = scalar_lea.sflag [#allocation4], 1
    %17 = vsyncpa %s16, 0
    loop: start=0, step=1, limit=4
    $region2: #{tpu_custom_call.1} parent=1 // loop_pre_header
      _
    $region3: #{tpu_custom_call.1} parent=1 // loop_header
      %s19 = sphi 0, %s23
      %p20 = scmp.ge.s32.totalorder %s19, 4
      %s29 = sphi 0, %s31
      %s32 = sphi 0, %s29
      %s33 = sphi 0, %s32
      %s49 = sphi 0, %s33
      %s55 = sphi 0, %s57
      %s58 = sphi 0, %s55
      %s59 = sphi 0, %s58
      %s75 = sphi 0, %s59
      %s79 = sphi 0, %s79
      %s81 = sphi 0, %s79
      %s82 = sphi 0, %s81
      %s96 = sphi 0, %s82
      %s100 = sphi 0, %s100
      %s102 = sphi 0, %s100
      %s103 = sphi 0, %s102
      %s117 = sphi 0, %s103
      %s121 = sphi 0, %s121
      %s123 = sphi 0, %s121
      %s124 = sphi 0, %s123
      %s138 = sphi 0, %s124
      %s142 = sphi 0, %s142
      %s144 = sphi 0, %s142
      %s145 = sphi 0, %s144
      %s159 = sphi 0, %s145
      %s163 = sphi 0, %s163
      %s165 = sphi 0, %s163
      %s166 = sphi 0, %s165
      %s180 = sphi 0, %s166
      %s184 = sphi 0, %s184
      %s186 = sphi 0, %s184
      %s187 = sphi 0, %s186
      %s201 = sphi 0, %s187
      %s205 = sphi 0, %s205
      %s207 = sphi 0, %s205
      %s208 = sphi 0, %s207
      %s222 = sphi 0, %s208
      %s228 = sphi 0, %s230
      %s231 = sphi 0, %s228
      %s232 = sphi 0, %s231
      %s248 = sphi 0, %s232
    $region4: #{tpu_custom_call.1} parent=1 // loop_header_branch
      %22 = sbr.rel (%p20) target = $region8
    $region5: #{tpu_custom_call.1} parent=1 // loop_body
      %s24 = ssub.s32 %s19, 1
      %s25 = ssub.s32 %s19, 2
      %s26 = sadd.s32 %s19, 1
      %s27 = ssub.s32 %s19, %s26
      %p28 = scmp.eq.s32.totalorder %s27, 0
      %s30 = sadd.s32 %s29, 1
      %s31 = scalar_select %p28, %s29, %s30
      %p34 = pneg %p28
      %p35 = scmp.eq.s32.totalorder %s19, 1
      %p36 = por %p34, %p35
      %p37 = scmp.ne.s32.totalorder %s29, %s32
      %p38 = scmp.eq.s32.totalorder %s19, 0
      %p39 = por %p37, %p38
      %p40 = scmp.ne.s32.totalorder %s29, %s32
      %p41 = scmp.eq.s32.totalorder %s24, 1
      %p42 = por %p40, %p41
      %p43 = scmp.ne.s32.totalorder %s32, %s33
      %p44 = scmp.eq.s32.totalorder %s24, 0
      %p45 = por %p43, %p44
      %p46 = scmp.ne.s32.totalorder %s32, %s33
      %p47 = scmp.eq.s32.totalorder %s25, 1
      %p48 = por %p46, %p47
      %p50 = scmp.ne.s32.totalorder %s33, %s49
      %p51 = scmp.eq.s32.totalorder %s25, 0
      %p52 = por %p50, %p51
      %s53 = ssub.s32 %s19, %s26
      %p54 = scmp.eq.s32.totalorder %s53, 0
      %s56 = sadd.s32 %s55, 1
      %s57 = scalar_select %p54, %s55, %s56
      %p60 = pneg %p54
      %p61 = scmp.eq.s32.totalorder %s19, 1
      %p62 = por %p60, %p61
      %p63 = scmp.ne.s32.totalorder %s55, %s58
      %p64 = scmp.eq.s32.totalorder %s19, 0
      %p65 = por %p63, %p64
      %p66 = scmp.ne.s32.totalorder %s55, %s58
      %p67 = scmp.eq.s32.totalorder %s24, 1
      %p68 = por %p66, %p67
      %p69 = scmp.ne.s32.totalorder %s58, %s59
      %p70 = scmp.eq.s32.totalorder %s24, 0
      %p71 = por %p69, %p70
      %p72 = scmp.ne.s32.totalorder %s58, %s59
      %p73 = scmp.eq.s32.totalorder %s25, 1
      %p74 = por %p72, %p73
      %p76 = scmp.ne.s32.totalorder %s59, %s75
      %p77 = scmp.eq.s32.totalorder %s25, 0
      %p78 = por %p76, %p77
      %s80 = sadd.s32 %s79, 1
      %p83 = scmp.eq.s32.totalorder %s19, 1
      %p84 = scmp.ne.s32.totalorder %s79, %s81
      %p85 = scmp.eq.s32.totalorder %s19, 0
      %p86 = por %p84, %p85
      %p87 = scmp.ne.s32.totalorder %s79, %s81
      %p88 = scmp.eq.s32.totalorder %s24, 1
      %p89 = por %p87, %p88
      %p90 = scmp.ne.s32.totalorder %s81, %s82
      %p91 = scmp.eq.s32.totalorder %s24, 0
      %p92 = por %p90, %p91
      %p93 = scmp.ne.s32.totalorder %s81, %s82
      %p94 = scmp.eq.s32.totalorder %s25, 1
      %p95 = por %p93, %p94
      %p97 = scmp.ne.s32.totalorder %s82, %s96
      %p98 = scmp.eq.s32.totalorder %s25, 0
      %p99 = por %p97, %p98
      %s101 = sadd.s32 %s100, 1
      %p104 = scmp.eq.s32.totalorder %s19, 1
      %p105 = scmp.ne.s32.totalorder %s100, %s102
      %p106 = scmp.eq.s32.totalorder %s19, 0
      %p107 = por %p105, %p106
      %p108 = scmp.ne.s32.totalorder %s100, %s102
      %p109 = scmp.eq.s32.totalorder %s24, 1
      %p110 = por %p108, %p109
      %p111 = scmp.ne.s32.totalorder %s102, %s103
      %p112 = scmp.eq.s32.totalorder %s24, 0
      %p113 = por %p111, %p112
      %p114 = scmp.ne.s32.totalorder %s102, %s103
      %p115 = scmp.eq.s32.totalorder %s25, 1
      %p116 = por %p114, %p115
      %p118 = scmp.ne.s32.totalorder %s103, %s117
      %p119 = scmp.eq.s32.totalorder %s25, 0
      %p120 = por %p118, %p119
      %s122 = sadd.s32 %s121, 1
      %p125 = scmp.eq.s32.totalorder %s19, 1
      %p126 = scmp.ne.s32.totalorder %s121, %s123
      %p127 = scmp.eq.s32.totalorder %s19, 0
      %p128 = por %p126, %p127
      %p129 = scmp.ne.s32.totalorder %s121, %s123
      %p130 = scmp.eq.s32.totalorder %s24, 1
      %p131 = por %p129, %p130
      %p132 = scmp.ne.s32.totalorder %s123, %s124
      %p133 = scmp.eq.s32.totalorder %s24, 0
      %p134 = por %p132, %p133
      %p135 = scmp.ne.s32.totalorder %s123, %s124
      %p136 = scmp.eq.s32.totalorder %s25, 1
      %p137 = por %p135, %p136
      %p139 = scmp.ne.s32.totalorder %s124, %s138
      %p140 = scmp.eq.s32.totalorder %s25, 0
      %p141 = por %p139, %p140
      %s143 = sadd.s32 %s142, 1
      %p146 = scmp.eq.s32.totalorder %s19, 1
      %p147 = scmp.ne.s32.totalorder %s142, %s144
      %p148 = scmp.eq.s32.totalorder %s19, 0
      %p149 = por %p147, %p148
      %p150 = scmp.ne.s32.totalorder %s142, %s144
      %p151 = scmp.eq.s32.totalorder %s24, 1
      %p152 = por %p150, %p151
      %p153 = scmp.ne.s32.totalorder %s144, %s145
      %p154 = scmp.eq.s32.totalorder %s24, 0
      %p155 = por %p153, %p154
      %p156 = scmp.ne.s32.totalorder %s144, %s145
      %p157 = scmp.eq.s32.totalorder %s25, 1
      %p158 = por %p156, %p157
      %p160 = scmp.ne.s32.totalorder %s145, %s159
      %p161 = scmp.eq.s32.totalorder %s25, 0
      %p162 = por %p160, %p161
      %s164 = sadd.s32 %s163, 1
      %p167 = scmp.eq.s32.totalorder %s19, 1
      %p168 = scmp.ne.s32.totalorder %s163, %s165
      %p169 = scmp.eq.s32.totalorder %s19, 0
      %p170 = por %p168, %p169
      %p171 = scmp.ne.s32.totalorder %s163, %s165
      %p172 = scmp.eq.s32.totalorder %s24, 1
      %p173 = por %p171, %p172
      %p174 = scmp.ne.s32.totalorder %s165, %s166
      %p175 = scmp.eq.s32.totalorder %s24, 0
      %p176 = por %p174, %p175
      %p177 = scmp.ne.s32.totalorder %s165, %s166
      %p178 = scmp.eq.s32.totalorder %s25, 1
      %p179 = por %p177, %p178
      %p181 = scmp.ne.s32.totalorder %s166, %s180
      %p182 = scmp.eq.s32.totalorder %s25, 0
      %p183 = por %p181, %p182
      %s185 = sadd.s32 %s184, 1
      %p188 = scmp.eq.s32.totalorder %s19, 1
      %p189 = scmp.ne.s32.totalorder %s184, %s186
      %p190 = scmp.eq.s32.totalorder %s19, 0
      %p191 = por %p189, %p190
      %p192 = scmp.ne.s32.totalorder %s184, %s186
      %p193 = scmp.eq.s32.totalorder %s24, 1
      %p194 = por %p192, %p193
      %p195 = scmp.ne.s32.totalorder %s186, %s187
      %p196 = scmp.eq.s32.totalorder %s24, 0
      %p197 = por %p195, %p196
      %p198 = scmp.ne.s32.totalorder %s186, %s187
      %p199 = scmp.eq.s32.totalorder %s25, 1
      %p200 = por %p198, %p199
      %p202 = scmp.ne.s32.totalorder %s187, %s201
      %p203 = scmp.eq.s32.totalorder %s25, 0
      %p204 = por %p202, %p203
      %s206 = sadd.s32 %s205, 1
      %p209 = scmp.eq.s32.totalorder %s19, 1
      %p210 = scmp.ne.s32.totalorder %s205, %s207
      %p211 = scmp.eq.s32.totalorder %s19, 0
      %p212 = por %p210, %p211
      %p213 = scmp.ne.s32.totalorder %s205, %s207
      %p214 = scmp.eq.s32.totalorder %s24, 1
      %p215 = por %p213, %p214
      %p216 = scmp.ne.s32.totalorder %s207, %s208
      %p217 = scmp.eq.s32.totalorder %s24, 0
      %p218 = por %p216, %p217
      %p219 = scmp.ne.s32.totalorder %s207, %s208
      %p220 = scmp.eq.s32.totalorder %s25, 1
      %p221 = por %p219, %p220
      %p223 = scmp.ne.s32.totalorder %s208, %s222
      %p224 = scmp.eq.s32.totalorder %s25, 0
      %p225 = por %p223, %p224
      %s226 = ssub.s32 %s19, %s26
      %p227 = scmp.eq.s32.totalorder %s226, 0
      %s229 = sadd.s32 %s228, 1
      %s230 = scalar_select %p227, %s228, %s229
      %p233 = pneg %p227
      %p234 = scmp.eq.s32.totalorder %s19, 1
      %p235 = por %p233, %p234
      %p236 = scmp.ne.s32.totalorder %s228, %s231
      %p237 = scmp.eq.s32.totalorder %s19, 0
      %p238 = por %p236, %p237
      %p239 = scmp.ne.s32.totalorder %s228, %s231
      %p240 = scmp.eq.s32.totalorder %s24, 1
      %p241 = por %p239, %p240
      %p242 = scmp.ne.s32.totalorder %s231, %s232
      %p243 = scmp.eq.s32.totalorder %s24, 0
      %p244 = por %p242, %p243
      %p245 = scmp.ne.s32.totalorder %s231, %s232
      %p246 = scmp.eq.s32.totalorder %s25, 1
      %p247 = por %p245, %p246
      %p249 = scmp.ne.s32.totalorder %s232, %s248
      %p250 = scmp.eq.s32.totalorder %s25, 0
      %p251 = por %p249, %p250
      %p252 = scmp.le.s32.totalorder 1, %s19
      %p253 = scmp.lt.s32.totalorder %s19, 3
      %p254 = pnand %p252, %p253
      %p255 = pneg %p254
      // Predicated region
      $region9: #{tpu_custom_call.1} parent=5 // pred_check
        _
      $region10: #{tpu_custom_call.1} parent=5 // pred_check_branch
        %257 = sbr.rel (%p254) target = $region12
      $region11: #{tpu_custom_call.1} parent=5 // pred_region
        %s258 = ssub.s32 %s19, 1
        // Predicated region
        $region13: #{tpu_custom_call.1} parent=11 // pred_check
          %p259 = pneg %p92
        $region14: #{tpu_custom_call.1} parent=11 // pred_check_branch
          %261 = sbr.rel (%p259) target = $region16
        $region15: #{tpu_custom_call.1} parent=11 // pred_region
          _
        $region16: #{tpu_custom_call.1} parent=11 // pred_fallthru
          _
        // Predicated region
        $region17: #{tpu_custom_call.1} parent=11 // pred_check
          %p262 = pneg %p113
        $region18: #{tpu_custom_call.1} parent=11 // pred_check_branch
          %264 = sbr.rel (%p262) target = $region20
        $region19: #{tpu_custom_call.1} parent=11 // pred_region
          _
        $region20: #{tpu_custom_call.1} parent=11 // pred_fallthru
          _
        // Predicated region
        $region21: #{tpu_custom_call.1} parent=11 // pred_check
          %p265 = pneg %p134
        $region22: #{tpu_custom_call.1} parent=11 // pred_check_branch
          %267 = sbr.rel (%p265) target = $region24
        $region23: #{tpu_custom_call.1} parent=11 // pred_region
          _
        $region24: #{tpu_custom_call.1} parent=11 // pred_fallthru
          _
        // Predicated region
        $region25: #{tpu_custom_call.1} parent=11 // pred_check
          %p268 = pneg %p155
        $region26: #{tpu_custom_call.1} parent=11 // pred_check_branch
          %270 = sbr.rel (%p268) target = $region28
        $region27: #{tpu_custom_call.1} parent=11 // pred_region
          _
        $region28: #{tpu_custom_call.1} parent=11 // pred_fallthru
          _
        // Predicated region
        $region29: #{tpu_custom_call.1} parent=11 // pred_check
          %p271 = pneg %p176
        $region30: #{tpu_custom_call.1} parent=11 // pred_check_branch
          %273 = sbr.rel (%p271) target = $region32
        $region31: #{tpu_custom_call.1} parent=11 // pred_region
          _
        $region32: #{tpu_custom_call.1} parent=11 // pred_fallthru
          _
        // Predicated region
        $region33: #{tpu_custom_call.1} parent=11 // pred_check
          %p274 = pneg %p197
        $region34: #{tpu_custom_call.1} parent=11 // pred_check_branch
          %276 = sbr.rel (%p274) target = $region36
        $region35: #{tpu_custom_call.1} parent=11 // pred_region
          _
        $region36: #{tpu_custom_call.1} parent=11 // pred_fallthru
          _
        // Predicated region
        $region37: #{tpu_custom_call.1} parent=11 // pred_check
          %p277 = pneg %p218
        $region38: #{tpu_custom_call.1} parent=11 // pred_check_branch
          %279 = sbr.rel (%p277) target = $region40
        $region39: #{tpu_custom_call.1} parent=11 // pred_region
          _
        $region40: #{tpu_custom_call.1} parent=11 // pred_fallthru
          _
      $region12: #{tpu_custom_call.1} parent=5 // pred_fallthru
        _
      %p280 = scmp.lt.s32.totalorder %s19, 2
      // Predicated region
      $region41: #{tpu_custom_call.1} parent=5 // pred_check
        %p281 = pneg %p280
      $region42: #{tpu_custom_call.1} parent=5 // pred_check_branch
        %283 = sbr.rel (%p281) target = $region44
      $region43: #{tpu_custom_call.1} parent=5 // pred_region
        // Predicated region
        $region45: #{tpu_custom_call.1} parent=43 // pred_check
          %p284 = pneg %p39
        $region46: #{tpu_custom_call.1} parent=43 // pred_check_branch
          %286 = sbr.rel (%p284) target = $region48
        $region47: #{tpu_custom_call.1} parent=43 // pred_region
          %s287 = smul.u32 16, %s19
          %p288 = scmp.lt.s32.totalorder %s287, 31
          %s289 = scalar_select %p288, %s287, 31
          %s290 = smul.addr %s289, 4
          %s291 = scalar_lea.vmem %s0, %s290
          %s292 = smul.u32 16, %s19
        $region48: #{tpu_custom_call.1} parent=43 // pred_fallthru
          _
        // Predicated region
        $region49: #{tpu_custom_call.1} parent=43 // pred_check
          %p293 = pneg %p65
        $region50: #{tpu_custom_call.1} parent=43 // pred_check_branch
          %295 = sbr.rel (%p293) target = $region52
        $region51: #{tpu_custom_call.1} parent=43 // pred_region
          %s296 = smul.u32 16, %s19
          %p297 = scmp.lt.s32.totalorder %s296, 31
          %s298 = scalar_select %p297, %s296, 31
          %s299 = smul.addr %s298, 4
          %s300 = scalar_lea.vmem %s1, %s299
          %s301 = smul.u32 16, %s19
        $region52: #{tpu_custom_call.1} parent=43 // pred_fallthru
          _
      $region44: #{tpu_custom_call.1} parent=5 // pred_fallthru
        _
      %p302 = scmp.le.s32.totalorder 1, %s19
      %p303 = scmp.lt.s32.totalorder %s19, 3
      %p304 = pnand %p302, %p303
      %p305 = pneg %p304
      // Predicated region
      $region53: #{tpu_custom_call.1} parent=5 // pred_check
        _
      $region54: #{tpu_custom_call.1} parent=5 // pred_check_branch
        %307 = sbr.rel (%p304) target = $region56
      $region55: #{tpu_custom_call.1} parent=5 // pred_region
        %s308 = ssub.s32 %s19, 1
        %s309 = smul.u32 16, %s24
        %p310 = scmp.lt.s32.totalorder %s309, 31
        %s311 = scalar_select %p310, %s309, 31
        %s312 = smul.addr %s311, 4
        %s313 = scalar_lea.vmem %s0, %s312
        %p314 = pneg %p45
        %p315 = pneg %p42
        %s316 = smul.u32 16, %s24
        %p317 = scmp.lt.s32.totalorder %s316, 31
        %s318 = scalar_select %p317, %s316, 31
        %s319 = smul.addr %s318, 4
        %s320 = scalar_lea.vmem %s1, %s319
        %p321 = pneg %p71
        %p322 = pneg %p68
        %p323 = pneg %p92
        %p324 = pneg %p89
        %p325 = pneg %p113
        %p326 = pneg %p110
        %p327 = pneg %p134
        %p328 = pneg %p131
        %p329 = pneg %p155
        %p330 = pneg %p152
        %p331 = pneg %p176
        %p332 = pneg %p173
        %p333 = pneg %p197
        %p334 = pneg %p194
        %p335 = pneg %p218
        %p336 = pneg %p215
        %p337 = pneg %p244
        %p338 = pneg %p241
        %s339 = sand.u32 %s231, 1
        %s340 = scalar_lea.sflag [#allocation4], %s339
        %s341 = sand.u32 %s231, 1
        %s342 = scalar_lea.vmem [#allocation3], %s341
        %s343 = smul.u32 16, %s24
        %p344 = scmp.lt.s32.totalorder %s343, 31
        %s345 = scalar_select %p344, %s343, 31
        %s346 = smul.addr %s345, 4
        %s347 = scalar_lea.vmem %s0, %s346
        %s348 = smul.u32 16, %s24
        %s349 = smul.u32 16, %s24
        %p350 = scmp.lt.s32.totalorder %s349, 31
        %s351 = scalar_select %p350, %s349, 31
        %s352 = smul.addr %s351, 4
        %s353 = scalar_lea.vmem %s1, %s352
        %s354 = smul.u32 16, %s24
        %v356 = vld [vmem:[%s347] sm:$0xf]
        %v357 = vld [vmem:[%s347 + $0x4] sm:$0xf]
        %v358 = vld [vmem:[%s347 + $0x8] sm:$0xf]
        %v359 = vld [vmem:[%s347 + $0xc] sm:$0xf]
        %v360 = vld [vmem:[%s347 + $0x10] sm:$0xf]
        %v361 = vld [vmem:[%s347 + $0x14] sm:$0xf]
        %v362 = vld [vmem:[%s347 + $0x18] sm:$0xf]
        %v363 = vld [vmem:[%s347 + $0x1c] sm:$0xf]
        %v364 = vld [vmem:[%s347 + $0x20] sm:$0xf]
        %v365 = vld [vmem:[%s347 + $0x24] sm:$0xf]
        %v366 = vld [vmem:[%s347 + $0x28] sm:$0xf]
        %v367 = vld [vmem:[%s347 + $0x2c] sm:$0xf]
        %v368 = vld [vmem:[%s347 + $0x30] sm:$0xf]
        %v369 = vld [vmem:[%s347 + $0x34] sm:$0xf]
        %v370 = vld [vmem:[%s347 + $0x38] sm:$0xf]
        %v371 = vld [vmem:[%s347 + $0x3c] sm:$0xf]
        %v372 = vld [vmem:[%s353] sm:$0xf]
        %v373 = vld [vmem:[%s353 + $0x4] sm:$0xf]
        %v374 = vld [vmem:[%s353 + $0x8] sm:$0xf]
        %v375 = vld [vmem:[%s353 + $0xc] sm:$0xf]
        %v376 = vld [vmem:[%s353 + $0x10] sm:$0xf]
        %v377 = vld [vmem:[%s353 + $0x14] sm:$0xf]
        %v378 = vld [vmem:[%s353 + $0x18] sm:$0xf]
        %v379 = vld [vmem:[%s353 + $0x1c] sm:$0xf]
        %v380 = vld [vmem:[%s353 + $0x20] sm:$0xf]
        %v381 = vld [vmem:[%s353 + $0x24] sm:$0xf]
        %v382 = vld [vmem:[%s353 + $0x28] sm:$0xf]
        %v383 = vld [vmem:[%s353 + $0x2c] sm:$0xf]
        %v384 = vld [vmem:[%s353 + $0x30] sm:$0xf]
        %v385 = vld [vmem:[%s353 + $0x34] sm:$0xf]
        %v386 = vld [vmem:[%s353 + $0x38] sm:$0xf]
        %v387 = vld [vmem:[%s353 + $0x3c] sm:$0xf]
        %v388 = vld [vmem:[%s2] sm:$0xf]
        %v389 = vld [vmem:[%s2 + $0x4] sm:$0xf]
        %v390 = vld [vmem:[%s2 + $0x8] sm:$0xf]
        %v391 = vld [vmem:[%s2 + $0xc] sm:$0xf]
        %v392 = vld [vmem:[%s2 + $0x10] sm:$0xf]
        %v393 = vld [vmem:[%s3] sm:$0xf]
        %v394 = vld [vmem:[%s3 + $0x4] sm:$0xf]
        %v395 = vld [vmem:[%s3 + $0x8] sm:$0xf]
        %v396 = vld [vmem:[%s3 + $0xc] sm:$0xf]
        %v397 = vld [vmem:[%s3 + $0x10] sm:$0xf]
        %v398 = vld [vmem:[%s3 + $0x14] sm:$0xf]
        %v399 = vld [vmem:[%s3 + $0x18] sm:$0xf]
        %v400 = vld [vmem:[%s3 + $0x1c] sm:$0xf]
        %v401 = vld [vmem:[%s3 + $0x20] sm:$0xf]
        %v402 = vld [vmem:[%s3 + $0x24] sm:$0xf]
        %v403 = vld [vmem:[%s3 + $0x28] sm:$0xf]
        %v404 = vld [vmem:[%s3 + $0x2c] sm:$0xf]
        %v405 = vld [vmem:[%s3 + $0x30] sm:$0xf]
        %v406 = vld [vmem:[%s3 + $0x34] sm:$0xf]
        %v407 = vld [vmem:[%s3 + $0x38] sm:$0xf]
        %v408 = vld [vmem:[%s3 + $0x3c] sm:$0xf]
        %v409 = vld [vmem:[%s4] sm:$0xf]
        %v410 = vld [vmem:[%s4 + $0x4] sm:$0xf]
        %v411 = vld [vmem:[%s4 + $0x8] sm:$0xf]
        %v412 = vld [vmem:[%s4 + $0xc] sm:$0xf]
        %v413 = vld [vmem:[%s4 + $0x10] sm:$0xf]
        %v414 = vld [vmem:[%s4 + $0x14] sm:$0xf]
        %v415 = vld [vmem:[%s4 + $0x18] sm:$0xf]
        %v416 = vld [vmem:[%s4 + $0x1c] sm:$0xf]
        %v417 = vld [vmem:[%s4 + $0x20] sm:$0xf]
        %v418 = vld [vmem:[%s4 + $0x24] sm:$0xf]
        %v419 = vld [vmem:[%s4 + $0x28] sm:$0xf]
        %v420 = vld [vmem:[%s4 + $0x2c] sm:$0xf]
        %v421 = vld [vmem:[%s5] sm:$0xf]
        %v422 = vld [vmem:[%s5 + $0x4] sm:$0xf]
        %v423 = vld [vmem:[%s5 + $0x8] sm:$0xf]
        %v424 = vld [vmem:[%s5 + $0xc] sm:$0xf]
        %v425 = vld [vmem:[%s5 + $0x10] sm:$0xf]
        %v426 = vld [vmem:[%s5 + $0x14] sm:$0xf]
        %v427 = vld [vmem:[%s5 + $0x18] sm:$0xf]
        %v428 = vld [vmem:[%s5 + $0x1c] sm:$0xf]
        %v429 = vld [vmem:[%s5 + $0x20] sm:$0xf]
        %v430 = vld [vmem:[%s5 + $0x24] sm:$0xf]
        %v431 = vld [vmem:[%s5 + $0x28] sm:$0xf]
        %v432 = vld [vmem:[%s5 + $0x2c] sm:$0xf]
        %v433 = vld [vmem:[%s5 + $0x30] sm:$0xf]
        %v434 = vld [vmem:[%s5 + $0x34] sm:$0xf]
        %v435 = vld [vmem:[%s5 + $0x38] sm:$0xf]
        %v436 = vld [vmem:[%s5 + $0x3c] sm:$0xf]
        %v437 = vld [vmem:[%s6] sm:$0xf]
        %v438 = vld [vmem:[%s6 + $0x4] sm:$0xf]
        %v439 = vld [vmem:[%s6 + $0x8] sm:$0xf]
        %v440 = vld [vmem:[%s6 + $0xc] sm:$0xf]
        %v441 = vld [vmem:[%s6 + $0x10] sm:$0xf]
        %v442 = vld [vmem:[%s6 + $0x14] sm:$0xf]
        %v443 = vld [vmem:[%s6 + $0x18] sm:$0xf]
        %v444 = vld [vmem:[%s6 + $0x1c] sm:$0xf]
        %v445 = vld [vmem:[%s7] sm:$0xff]
        %s446 = sld [smem:[#allocation2]]
        %v447 = vperm.slane %v445, 0
        %v464 = vunpack.c.l.b16 %v372
        %v465 = vunpack.c.l.b16 %v373
        %v466 = vunpack.c.l.b16 %v374
        %v467 = vunpack.c.l.b16 %v375
        %v468 = vunpack.c.l.b16 %v376
        %v469 = vunpack.c.l.b16 %v377
        %v470 = vunpack.c.l.b16 %v378
        %v471 = vunpack.c.l.b16 %v379
        %v472 = vunpack.c.l.b16 %v380
        %v473 = vunpack.c.l.b16 %v381
        %v474 = vunpack.c.l.b16 %v382
        %v475 = vunpack.c.l.b16 %v383
        %v476 = vunpack.c.l.b16 %v384
        %v477 = vunpack.c.l.b16 %v385
        %v478 = vunpack.c.l.b16 %v386
        %v479 = vunpack.c.l.b16 %v387
        %v480 = vpack.c.b16 %v465, %v464
        %v481 = vpack.c.b16 %v467, %v466
        %v482 = vpack.c.b16 %v469, %v468
        %v483 = vpack.c.b16 %v471, %v470
        %v484 = vpack.c.b16 %v473, %v472
        %v485 = vpack.c.b16 %v475, %v474
        %v486 = vpack.c.b16 %v477, %v476
        %v487 = vpack.c.b16 %v479, %v478
        %v493 = vunpack.c.l.b16 %v388
        %v494 = vunpack.c.l.b16 %v389
        %v495 = vunpack.c.l.b16 %v390
        %v496 = vunpack.c.l.b16 %v391
        %v497 = vunpack.c.l.b16 %v392
        %v498 = vpack.c.b16 %v494, %v493
        %v499 = vpack.c.b16 %v496, %v495
        %v500 = vpack.c.b16 %v497, %v497
        %vm503 = vcmask 326656
        %v505 = vsel %vm503, %v480, 0
        %v508 = vsel %vm503, %v481, 0
        %v511 = vsel %vm503, %v482, 0
        %v514 = vsel %vm503, %v483, 0
        %v517 = vsel %vm503, %v484, 0
        %v520 = vsel %vm503, %v485, 0
        %v523 = vsel %vm503, %v486, 0
        %v526 = vsel %vm503, %v487, 0
        %vm528 = vcmask 1043456
        %v530 = vsel %vm528, %v500, 0
        %532 = vmatpush.bf16.msra.mxu0 0
        %533 = vmatpush.bf16.msra.mxu0 0
        %534 = vmatpush.bf16.msra.mxu0 0
        %535 = vmatpush.bf16.msra.mxu0 0
        %536 = vmatpush.bf16.msra.mxu0 0
        %537 = vmatpush.bf16.msra.mxu0 %v530
        %538 = vmatpush.bf16.msra.mxu0 %v499
        %539 = vmatpush.bf16.msra.mxu0 %v498
        %540 = vmatmul.bf16.gmra.mxu0 %v505
        %v541 = vpop.f32.mrf.mxu0
        %v542 = vadd.f32 %v447, %v541
        %v543 = vpop.f32.mrf.mxu0
        %v544 = vadd.f32 %v447, %v543
        %545 = vmatmul.bf16.gmra.mxu0 %v508
        %v546 = vpop.f32.mrf.mxu0
        %v547 = vadd.f32 %v447, %v546
        %v548 = vpop.f32.mrf.mxu0
        %v549 = vadd.f32 %v447, %v548
        %550 = vmatmul.bf16.gmra.mxu0 %v511
        %v551 = vpop.f32.mrf.mxu0
        %v552 = vadd.f32 %v447, %v551
        %v553 = vpop.f32.mrf.mxu0
        %v554 = vadd.f32 %v447, %v553
        %555 = vmatmul.bf16.gmra.mxu0 %v514
        %v556 = vpop.f32.mrf.mxu0
        %v557 = vadd.f32 %v447, %v556
        %v558 = vpop.f32.mrf.mxu0
        %v559 = vadd.f32 %v447, %v558
        %560 = vmatmul.bf16.gmra.mxu0 %v517
        %v561 = vpop.f32.mrf.mxu0
        %v562 = vadd.f32 %v447, %v561
        %v563 = vpop.f32.mrf.mxu0
        %v564 = vadd.f32 %v447, %v563
        %565 = vmatmul.bf16.gmra.mxu0 %v520
        %v566 = vpop.f32.mrf.mxu0
        %v567 = vadd.f32 %v447, %v566
        %v568 = vpop.f32.mrf.mxu0
        %v569 = vadd.f32 %v447, %v568
        %570 = vmatmul.bf16.gmra.mxu0 %v523
        %v571 = vpop.f32.mrf.mxu0
        %v572 = vadd.f32 %v447, %v571
        %v573 = vpop.f32.mrf.mxu0
        %v574 = vadd.f32 %v447, %v573
        %575 = vmatmul.bf16.gmra.mxu0 %v526
        %v576 = vpop.f32.mrf.mxu0
        %v577 = vadd.f32 %v447, %v576
        %v578 = vpop.f32.mrf.mxu0
        %v579 = vadd.f32 %v447, %v578
        %580 = vdwg.mxu0
        %v581 = vmax.f32 %v542, 0.0
        %v582 = vmax.f32 %v544, 0.0
        %v583 = vmax.f32 %v547, 0.0
        %v584 = vmax.f32 %v549, 0.0
        %v585 = vmax.f32 %v552, 0.0
        %v586 = vmax.f32 %v554, 0.0
        %v587 = vmax.f32 %v557, 0.0
        %v588 = vmax.f32 %v559, 0.0
        %v589 = vmax.f32 %v562, 0.0
        %v590 = vmax.f32 %v564, 0.0
        %v591 = vmax.f32 %v567, 0.0
        %v592 = vmax.f32 %v569, 0.0
        %v593 = vmax.f32 %v572, 0.0
        %v594 = vmax.f32 %v574, 0.0
        %v595 = vmax.f32 %v577, 0.0
        %v596 = vmax.f32 %v579, 0.0
        %v597 = vpack.c.bf16 %v582, %v581
        %v598 = vpack.c.bf16 %v584, %v583
        %v599 = vpack.c.bf16 %v586, %v585
        %v600 = vpack.c.bf16 %v588, %v587
        %v601 = vpack.c.bf16 %v590, %v589
        %v602 = vpack.c.bf16 %v592, %v591
        %v603 = vpack.c.bf16 %v594, %v593
        %v604 = vpack.c.bf16 %v596, %v595
        %v605 = vperm.slane %v445, 1
        %v622 = vunpack.c.l.b16 %v393
        %v623 = vunpack.c.l.b16 %v394
        %v624 = vunpack.c.l.b16 %v395
        %v625 = vunpack.c.l.b16 %v396
        %v626 = vunpack.c.l.b16 %v397
        %v627 = vunpack.c.l.b16 %v398
        %v628 = vunpack.c.l.b16 %v399
        %v629 = vunpack.c.l.b16 %v400
        %v630 = vunpack.c.l.b16 %v401
        %v631 = vunpack.c.l.b16 %v402
        %v632 = vunpack.c.l.b16 %v403
        %v633 = vunpack.c.l.b16 %v404
        %v634 = vunpack.c.l.b16 %v405
        %v635 = vunpack.c.l.b16 %v406
        %v636 = vunpack.c.l.b16 %v407
        %v637 = vunpack.c.l.b16 %v408
        %v638 = vpack.c.b16 %v623, %v622
        %v639 = vpack.c.b16 %v625, %v624
        %v640 = vpack.c.b16 %v627, %v626
        %v641 = vpack.c.b16 %v629, %v628
        %v642 = vpack.c.b16 %v631, %v630
        %v643 = vpack.c.b16 %v633, %v632
        %v644 = vpack.c.b16 %v635, %v634
        %v645 = vpack.c.b16 %v637, %v636
        %654 = vmatpush.bf16.msra.mxu0 %v645
        %655 = vmatpush.bf16.msra.mxu0 %v644
        %656 = vmatpush.bf16.msra.mxu0 %v643
        %657 = vmatpush.bf16.msra.mxu0 %v642
        %658 = vmatpush.bf16.msra.mxu0 %v641
        %659 = vmatpush.bf16.msra.mxu0 %v640
        %660 = vmatpush.bf16.msra.mxu0 %v639
        %661 = vmatpush.bf16.msra.mxu0 %v638
        %662 = vmatmul.bf16.gmra.mxu0 %v597
        %v663 = vpop.f32.mrf.mxu0
        %v664 = vadd.f32 %v605, %v663
        %v665 = vpop.f32.mrf.mxu0
        %v666 = vadd.f32 %v605, %v665
        %667 = vmatmul.bf16.gmra.mxu0 %v598
        %v668 = vpop.f32.mrf.mxu0
        %v669 = vadd.f32 %v605, %v668
        %v670 = vpop.f32.mrf.mxu0
        %v671 = vadd.f32 %v605, %v670
        %672 = vmatmul.bf16.gmra.mxu0 %v599
        %v673 = vpop.f32.mrf.mxu0
        %v674 = vadd.f32 %v605, %v673
        %v675 = vpop.f32.mrf.mxu0
        %v676 = vadd.f32 %v605, %v675
        %677 = vmatmul.bf16.gmra.mxu0 %v600
        %v678 = vpop.f32.mrf.mxu0
        %v679 = vadd.f32 %v605, %v678
        %v680 = vpop.f32.mrf.mxu0
        %v681 = vadd.f32 %v605, %v680
        %682 = vmatmul.bf16.gmra.mxu0 %v601
        %v683 = vpop.f32.mrf.mxu0
        %v684 = vadd.f32 %v605, %v683
        %v685 = vpop.f32.mrf.mxu0
        %v686 = vadd.f32 %v605, %v685
        %687 = vmatmul.bf16.gmra.mxu0 %v602
        %v688 = vpop.f32.mrf.mxu0
        %v689 = vadd.f32 %v605, %v688
        %v690 = vpop.f32.mrf.mxu0
        %v691 = vadd.f32 %v605, %v690
        %692 = vmatmul.bf16.gmra.mxu0 %v603
        %v693 = vpop.f32.mrf.mxu0
        %v694 = vadd.f32 %v605, %v693
        %v695 = vpop.f32.mrf.mxu0
        %v696 = vadd.f32 %v605, %v695
        %697 = vmatmul.bf16.gmra.mxu0 %v604
        %v698 = vpop.f32.mrf.mxu0
        %v699 = vadd.f32 %v605, %v698
        %v700 = vpop.f32.mrf.mxu0
        %v701 = vadd.f32 %v605, %v700
        %702 = vdwg.mxu0
        %v703 = vmax.f32 %v664, 0.0
        %v704 = vmax.f32 %v666, 0.0
        %v705 = vmax.f32 %v669, 0.0
        %v706 = vmax.f32 %v671, 0.0
        %v707 = vmax.f32 %v674, 0.0
        %v708 = vmax.f32 %v676, 0.0
        %v709 = vmax.f32 %v679, 0.0
        %v710 = vmax.f32 %v681, 0.0
        %v711 = vmax.f32 %v684, 0.0
        %v712 = vmax.f32 %v686, 0.0
        %v713 = vmax.f32 %v689, 0.0
        %v714 = vmax.f32 %v691, 0.0
        %v715 = vmax.f32 %v694, 0.0
        %v716 = vmax.f32 %v696, 0.0
        %v717 = vmax.f32 %v699, 0.0
        %v718 = vmax.f32 %v701, 0.0
        %v719 = vpack.c.bf16 %v704, %v703
        %v720 = vpack.c.bf16 %v706, %v705
        %v721 = vpack.c.bf16 %v708, %v707
        %v722 = vpack.c.bf16 %v710, %v709
        %v723 = vpack.c.bf16 %v712, %v711
        %v724 = vpack.c.bf16 %v714, %v713
        %v725 = vpack.c.bf16 %v716, %v715
        %v726 = vpack.c.bf16 %v718, %v717
        %v727 = vperm.slane %v445, 2
        %v740 = vunpack.c.l.b16 %v409
        %v741 = vunpack.c.l.b16 %v410
        %v742 = vunpack.c.l.b16 %v411
        %v743 = vunpack.c.l.b16 %v412
        %v744 = vunpack.c.l.b16 %v413
        %v745 = vunpack.c.l.b16 %v414
        %v746 = vunpack.c.l.b16 %v415
        %v747 = vunpack.c.l.b16 %v416
        %v748 = vunpack.c.l.b16 %v417
        %v749 = vunpack.c.l.b16 %v418
        %v750 = vunpack.c.l.b16 %v419
        %v751 = vunpack.c.l.b16 %v420
        %v752 = vpack.c.b16 %v741, %v740
        %v753 = vpack.c.b16 %v743, %v742
        %v754 = vpack.c.b16 %v745, %v744
        %v755 = vpack.c.b16 %v747, %v746
        %v756 = vpack.c.b16 %v749, %v748
        %v757 = vpack.c.b16 %v751, %v750
        %vm764 = vcmask 785408
        %v766 = vsel %vm764, %v719, 0
        %v769 = vsel %vm764, %v720, 0
        %v772 = vsel %vm764, %v721, 0
        %v775 = vsel %vm764, %v722, 0
        %v778 = vsel %vm764, %v723, 0
        %v781 = vsel %vm764, %v724, 0
        %v784 = vsel %vm764, %v725, 0
        %v787 = vsel %vm764, %v726, 0
        %789 = vmatpush.bf16.msra.mxu0 0
        %790 = vmatpush.bf16.msra.mxu0 0
        %791 = vmatpush.bf16.msra.mxu0 %v757
        %792 = vmatpush.bf16.msra.mxu0 %v756
        %793 = vmatpush.bf16.msra.mxu0 %v755
        %794 = vmatpush.bf16.msra.mxu0 %v754
        %795 = vmatpush.bf16.msra.mxu0 %v753
        %796 = vmatpush.bf16.msra.mxu0 %v752
        %797 = vmatmul.bf16.gmra.mxu0 %v766
        %v798 = vpop.f32.mrf.mxu0
        %v799 = vadd.f32 %v727, %v798
        %v800 = vpop.f32.mrf.mxu0
        %v801 = vadd.f32 %v727, %v800
        %802 = vmatmul.bf16.gmra.mxu0 %v769
        %v803 = vpop.f32.mrf.mxu0
        %v804 = vadd.f32 %v727, %v803
        %v805 = vpop.f32.mrf.mxu0
        %v806 = vadd.f32 %v727, %v805
        %807 = vmatmul.bf16.gmra.mxu0 %v772
        %v808 = vpop.f32.mrf.mxu0
        %v809 = vadd.f32 %v727, %v808
        %v810 = vpop.f32.mrf.mxu0
        %v811 = vadd.f32 %v727, %v810
        %812 = vmatmul.bf16.gmra.mxu0 %v775
        %v813 = vpop.f32.mrf.mxu0
        %v814 = vadd.f32 %v727, %v813
        %v815 = vpop.f32.mrf.mxu0
        %v816 = vadd.f32 %v727, %v815
        %817 = vmatmul.bf16.gmra.mxu0 %v778
        %v818 = vpop.f32.mrf.mxu0
        %v819 = vadd.f32 %v727, %v818
        %v820 = vpop.f32.mrf.mxu0
        %v821 = vadd.f32 %v727, %v820
        %822 = vmatmul.bf16.gmra.mxu0 %v781
        %v823 = vpop.f32.mrf.mxu0
        %v824 = vadd.f32 %v727, %v823
        %v825 = vpop.f32.mrf.mxu0
        %v826 = vadd.f32 %v727, %v825
        %827 = vmatmul.bf16.gmra.mxu0 %v784
        %v828 = vpop.f32.mrf.mxu0
        %v829 = vadd.f32 %v727, %v828
        %v830 = vpop.f32.mrf.mxu0
        %v831 = vadd.f32 %v727, %v830
        %832 = vmatmul.bf16.gmra.mxu0 %v787
        %v833 = vpop.f32.mrf.mxu0
        %v834 = vadd.f32 %v727, %v833
        %v835 = vpop.f32.mrf.mxu0
        %v836 = vadd.f32 %v727, %v835
        %837 = vdwg.mxu0
        %v838 = vpack.c.bf16 %v799, %v799
        %v839 = vpack.c.bf16 %v801, %v801
        %v840 = vpack.c.bf16 %v804, %v804
        %v841 = vpack.c.bf16 %v806, %v806
        %v842 = vpack.c.bf16 %v809, %v809
        %v843 = vpack.c.bf16 %v811, %v811
        %v844 = vpack.c.bf16 %v814, %v814
        %v845 = vpack.c.bf16 %v816, %v816
        %v846 = vpack.c.bf16 %v819, %v819
        %v847 = vpack.c.bf16 %v821, %v821
        %v848 = vpack.c.bf16 %v824, %v824
        %v849 = vpack.c.bf16 %v826, %v826
        %v850 = vpack.c.bf16 %v829, %v829
        %v851 = vpack.c.bf16 %v831, %v831
        %v852 = vpack.c.bf16 %v834, %v834
        %v853 = vpack.c.bf16 %v836, %v836
        %v870 = vunpack.c.l.b16 %v356
        %v871 = vunpack.c.l.b16 %v357
        %v872 = vunpack.c.l.b16 %v358
        %v873 = vunpack.c.l.b16 %v359
        %v874 = vunpack.c.l.b16 %v360
        %v875 = vunpack.c.l.b16 %v361
        %v876 = vunpack.c.l.b16 %v362
        %v877 = vunpack.c.l.b16 %v363
        %v878 = vunpack.c.l.b16 %v364
        %v879 = vunpack.c.l.b16 %v365
        %v880 = vunpack.c.l.b16 %v366
        %v881 = vunpack.c.l.b16 %v367
        %v882 = vunpack.c.l.b16 %v368
        %v883 = vunpack.c.l.b16 %v369
        %v884 = vunpack.c.l.b16 %v370
        %v885 = vunpack.c.l.b16 %v371
        %v886 = vpack.c.b16 %v871, %v870
        %v887 = vpack.c.b16 %v873, %v872
        %v888 = vpack.c.b16 %v875, %v874
        %v889 = vpack.c.b16 %v877, %v876
        %v890 = vpack.c.b16 %v879, %v878
        %v891 = vpack.c.b16 %v881, %v880
        %v892 = vpack.c.b16 %v883, %v882
        %v893 = vpack.c.b16 %v885, %v884
        %v910 = vunpack.c.l.b16 %v838
        %v911 = vunpack.c.l.b16 %v839
        %v912 = vunpack.c.l.b16 %v840
        %v913 = vunpack.c.l.b16 %v841
        %v914 = vunpack.c.l.b16 %v842
        %v915 = vunpack.c.l.b16 %v843
        %v916 = vunpack.c.l.b16 %v844
        %v917 = vunpack.c.l.b16 %v845
        %v918 = vunpack.c.l.b16 %v846
        %v919 = vunpack.c.l.b16 %v847
        %v920 = vunpack.c.l.b16 %v848
        %v921 = vunpack.c.l.b16 %v849
        %v922 = vunpack.c.l.b16 %v850
        %v923 = vunpack.c.l.b16 %v851
        %v924 = vunpack.c.l.b16 %v852
        %v925 = vunpack.c.l.b16 %v853
        %v926 = vpack.c.b16 %v911, %v910
        %v927 = vpack.c.b16 %v913, %v912
        %v928 = vpack.c.b16 %v915, %v914
        %v929 = vpack.c.b16 %v917, %v916
        %v930 = vpack.c.b16 %v919, %v918
        %v931 = vpack.c.b16 %v921, %v920
        %v932 = vpack.c.b16 %v923, %v922
        %v933 = vpack.c.b16 %v925, %v924
        %934 = vrot.lane.b32.xlu0 %v926, 64
        %v935 = vpop.permute.xlu0 %934
        %936 = vrot.lane.b32.xlu0 %v927, 64
        %v937 = vpop.permute.xlu0 %936
        %938 = vrot.lane.b32.xlu0 %v928, 64
        %v939 = vpop.permute.xlu0 %938
        %940 = vrot.lane.b32.xlu0 %v929, 64
        %v941 = vpop.permute.xlu0 %940
        %942 = vrot.lane.b32.xlu0 %v930, 64
        %v943 = vpop.permute.xlu0 %942
        %944 = vrot.lane.b32.xlu0 %v931, 64
        %v945 = vpop.permute.xlu0 %944
        %946 = vrot.lane.b32.xlu0 %v932, 64
        %v947 = vpop.permute.xlu0 %946
        %948 = vrot.lane.b32.xlu0 %v933, 64
        %v949 = vpop.permute.xlu0 %948
        %vm950 = vcmask 523264
        %v953 = vsel %vm950, %v886, %v935
        %v957 = vsel %vm950, %v887, %v937
        %v961 = vsel %vm950, %v888, %v939
        %v965 = vsel %vm950, %v889, %v941
        %v969 = vsel %vm950, %v890, %v943
        %v973 = vsel %vm950, %v891, %v945
        %v977 = vsel %vm950, %v892, %v947
        %v981 = vsel %vm950, %v893, %v949
        %v983 = vperm.slane %v445, 3
        %v1000 = vunpack.c.l.b16 %v421
        %v1001 = vunpack.c.l.b16 %v422
        %v1002 = vunpack.c.l.b16 %v423
        %v1003 = vunpack.c.l.b16 %v424
        %v1004 = vunpack.c.l.b16 %v425
        %v1005 = vunpack.c.l.b16 %v426
        %v1006 = vunpack.c.l.b16 %v427
        %v1007 = vunpack.c.l.b16 %v428
        %v1008 = vunpack.c.l.b16 %v429
        %v1009 = vunpack.c.l.b16 %v430
        %v1010 = vunpack.c.l.b16 %v431
        %v1011 = vunpack.c.l.b16 %v432
        %v1012 = vunpack.c.l.b16 %v433
        %v1013 = vunpack.c.l.b16 %v434
        %v1014 = vunpack.c.l.b16 %v435
        %v1015 = vunpack.c.l.b16 %v436
        %v1016 = vpack.c.b16 %v1001, %v1000
        %v1017 = vpack.c.b16 %v1003, %v1002
        %v1018 = vpack.c.b16 %v1005, %v1004
        %v1019 = vpack.c.b16 %v1007, %v1006
        %v1020 = vpack.c.b16 %v1009, %v1008
        %v1021 = vpack.c.b16 %v1011, %v1010
        %v1022 = vpack.c.b16 %v1013, %v1012
        %v1023 = vpack.c.b16 %v1015, %v1014
        %1032 = vmatpush.bf16.msra.mxu0 %v1023
        %1033 = vmatpush.bf16.msra.mxu0 %v1022
        %1034 = vmatpush.bf16.msra.mxu0 %v1021
        %1035 = vmatpush.bf16.msra.mxu0 %v1020
        %1036 = vmatpush.bf16.msra.mxu0 %v1019
        %1037 = vmatpush.bf16.msra.mxu0 %v1018
        %1038 = vmatpush.bf16.msra.mxu0 %v1017
        %1039 = vmatpush.bf16.msra.mxu0 %v1016
        %1040 = vmatmul.bf16.gmra.mxu0 %v953
        %v1041 = vpop.f32.mrf.mxu0
        %v1042 = vadd.f32 %v983, %v1041
        %v1043 = vpop.f32.mrf.mxu0
        %v1044 = vadd.f32 %v983, %v1043
        %1045 = vmatmul.bf16.gmra.mxu0 %v957
        %v1046 = vpop.f32.mrf.mxu0
        %v1047 = vadd.f32 %v983, %v1046
        %v1048 = vpop.f32.mrf.mxu0
        %v1049 = vadd.f32 %v983, %v1048
        %1050 = vmatmul.bf16.gmra.mxu0 %v961
        %v1051 = vpop.f32.mrf.mxu0
        %v1052 = vadd.f32 %v983, %v1051
        %v1053 = vpop.f32.mrf.mxu0
        %v1054 = vadd.f32 %v983, %v1053
        %1055 = vmatmul.bf16.gmra.mxu0 %v965
        %v1056 = vpop.f32.mrf.mxu0
        %v1057 = vadd.f32 %v983, %v1056
        %v1058 = vpop.f32.mrf.mxu0
        %v1059 = vadd.f32 %v983, %v1058
        %1060 = vmatmul.bf16.gmra.mxu0 %v969
        %v1061 = vpop.f32.mrf.mxu0
        %v1062 = vadd.f32 %v983, %v1061
        %v1063 = vpop.f32.mrf.mxu0
        %v1064 = vadd.f32 %v983, %v1063
        %1065 = vmatmul.bf16.gmra.mxu0 %v973
        %v1066 = vpop.f32.mrf.mxu0
        %v1067 = vadd.f32 %v983, %v1066
        %v1068 = vpop.f32.mrf.mxu0
        %v1069 = vadd.f32 %v983, %v1068
        %1070 = vmatmul.bf16.gmra.mxu0 %v977
        %v1071 = vpop.f32.mrf.mxu0
        %v1072 = vadd.f32 %v983, %v1071
        %v1073 = vpop.f32.mrf.mxu0
        %v1074 = vadd.f32 %v983, %v1073
        %1075 = vmatmul.bf16.gmra.mxu0 %v981
        %v1076 = vpop.f32.mrf.mxu0
        %v1077 = vadd.f32 %v983, %v1076
        %v1078 = vpop.f32.mrf.mxu0
        %v1079 = vadd.f32 %v983, %v1078
        %1080 = vdwg.mxu0
        %v1081 = vmax.f32 %v1042, 0.0
        %v1082 = vmax.f32 %v1044, 0.0
        %v1083 = vmax.f32 %v1047, 0.0
        %v1084 = vmax.f32 %v1049, 0.0
        %v1085 = vmax.f32 %v1052, 0.0
        %v1086 = vmax.f32 %v1054, 0.0
        %v1087 = vmax.f32 %v1057, 0.0
        %v1088 = vmax.f32 %v1059, 0.0
        %v1089 = vmax.f32 %v1062, 0.0
        %v1090 = vmax.f32 %v1064, 0.0
        %v1091 = vmax.f32 %v1067, 0.0
        %v1092 = vmax.f32 %v1069, 0.0
        %v1093 = vmax.f32 %v1072, 0.0
        %v1094 = vmax.f32 %v1074, 0.0
        %v1095 = vmax.f32 %v1077, 0.0
        %v1096 = vmax.f32 %v1079, 0.0
        %v1097 = vpack.c.bf16 %v1082, %v1081
        %v1098 = vpack.c.bf16 %v1084, %v1083
        %v1099 = vpack.c.bf16 %v1086, %v1085
        %v1100 = vpack.c.bf16 %v1088, %v1087
        %v1101 = vpack.c.bf16 %v1090, %v1089
        %v1102 = vpack.c.bf16 %v1092, %v1091
        %v1103 = vpack.c.bf16 %v1094, %v1093
        %v1104 = vpack.c.bf16 %v1096, %v1095
        %v1105 = vperm.slane %v445, 4
        %v1114 = vunpack.c.l.b16 %v437
        %v1115 = vunpack.c.l.b16 %v438
        %v1116 = vunpack.c.l.b16 %v439
        %v1117 = vunpack.c.l.b16 %v440
        %v1118 = vunpack.c.l.b16 %v441
        %v1119 = vunpack.c.l.b16 %v442
        %v1120 = vunpack.c.l.b16 %v443
        %v1121 = vunpack.c.l.b16 %v444
        %v1122 = vpack.c.b16 %v1115, %v1114
        %v1123 = vpack.c.b16 %v1117, %v1116
        %v1124 = vpack.c.b16 %v1119, %v1118
        %v1125 = vpack.c.b16 %v1121, %v1120
        %v1131 = vsel %vm950, %v1097, 0
        %v1134 = vsel %vm950, %v1098, 0
        %v1137 = vsel %vm950, %v1099, 0
        %v1140 = vsel %vm950, %v1100, 0
        %v1143 = vsel %vm950, %v1101, 0
        %v1146 = vsel %vm950, %v1102, 0
        %v1149 = vsel %vm950, %v1103, 0
        %v1152 = vsel %vm950, %v1104, 0
        %1154 = vmatpush.bf16.msra.mxu0 0
        %1155 = vmatpush.bf16.msra.mxu0 0
        %1156 = vmatpush.bf16.msra.mxu0 0
        %1157 = vmatpush.bf16.msra.mxu0 0
        %1158 = vmatpush.bf16.msra.mxu0 %v1125
        %1159 = vmatpush.bf16.msra.mxu0 %v1124
        %1160 = vmatpush.bf16.msra.mxu0 %v1123
        %1161 = vmatpush.bf16.msra.mxu0 %v1122
        %1162 = vmatmul.bf16.gmra.mxu0 %v1131
        %v1163 = vpop.f32.mrf.mxu0
        %v1164 = vadd.f32 %v1105, %v1163
        %v1165 = vpop.f32.mrf.mxu0
        %v1166 = vadd.f32 %v1105, %v1165
        %1167 = vmatmul.bf16.gmra.mxu0 %v1134
        %v1168 = vpop.f32.mrf.mxu0
        %v1169 = vadd.f32 %v1105, %v1168
        %v1170 = vpop.f32.mrf.mxu0
        %v1171 = vadd.f32 %v1105, %v1170
        %1172 = vmatmul.bf16.gmra.mxu0 %v1137
        %v1173 = vpop.f32.mrf.mxu0
        %v1174 = vadd.f32 %v1105, %v1173
        %v1175 = vpop.f32.mrf.mxu0
        %v1176 = vadd.f32 %v1105, %v1175
        %1177 = vmatmul.bf16.gmra.mxu0 %v1140
        %v1178 = vpop.f32.mrf.mxu0
        %v1179 = vadd.f32 %v1105, %v1178
        %v1180 = vpop.f32.mrf.mxu0
        %v1181 = vadd.f32 %v1105, %v1180
        %1182 = vmatmul.bf16.gmra.mxu0 %v1143
        %v1183 = vpop.f32.mrf.mxu0
        %v1184 = vadd.f32 %v1105, %v1183
        %v1185 = vpop.f32.mrf.mxu0
        %v1186 = vadd.f32 %v1105, %v1185
        %1187 = vmatmul.bf16.gmra.mxu0 %v1146
        %v1188 = vpop.f32.mrf.mxu0
        %v1189 = vadd.f32 %v1105, %v1188
        %v1190 = vpop.f32.mrf.mxu0
        %v1191 = vadd.f32 %v1105, %v1190
        %1192 = vmatmul.bf16.gmra.mxu0 %v1149
        %v1193 = vpop.f32.mrf.mxu0
        %v1194 = vadd.f32 %v1105, %v1193
        %v1195 = vpop.f32.mrf.mxu0
        %v1196 = vadd.f32 %v1105, %v1195
        %1197 = vmatmul.bf16.gmra.mxu0 %v1152
        %v1198 = vpop.f32.mrf.mxu0
        %v1199 = vadd.f32 %v1105, %v1198
        %v1200 = vpop.f32.mrf.mxu0
        %v1201 = vadd.f32 %v1105, %v1200
        %1202 = vdwg.mxu0
        %vm1203 = vcmask 261120
        %v1204 = vsel %vm1203, %v1164, 0.0
        %1205 = vadd.xlane.f32.xlu0 %v1204
        %v1206 = vpop.xlane.xlu0 %1205
        %v1207 = vsel %vm1203, %v1166, 0.0
        %1208 = vadd.xlane.f32.xlu0 %v1207
        %v1209 = vpop.xlane.xlu0 %1208
        %v1210 = vsel %vm1203, %v1169, 0.0
        %1211 = vadd.xlane.f32.xlu0 %v1210
        %v1212 = vpop.xlane.xlu0 %1211
        %v1213 = vsel %vm1203, %v1171, 0.0
        %1214 = vadd.xlane.f32.xlu0 %v1213
        %v1215 = vpop.xlane.xlu0 %1214
        %v1216 = vsel %vm1203, %v1174, 0.0
        %1217 = vadd.xlane.f32.xlu0 %v1216
        %v1218 = vpop.xlane.xlu0 %1217
        %v1219 = vsel %vm1203, %v1176, 0.0
        %1220 = vadd.xlane.f32.xlu0 %v1219
        %v1221 = vpop.xlane.xlu0 %1220
        %v1222 = vsel %vm1203, %v1179, 0.0
        %1223 = vadd.xlane.f32.xlu0 %v1222
        %v1224 = vpop.xlane.xlu0 %1223
        %v1225 = vsel %vm1203, %v1181, 0.0
        %1226 = vadd.xlane.f32.xlu0 %v1225
        %v1227 = vpop.xlane.xlu0 %1226
        %v1228 = vsel %vm1203, %v1184, 0.0
        %1229 = vadd.xlane.f32.xlu0 %v1228
        %v1230 = vpop.xlane.xlu0 %1229
        %v1231 = vsel %vm1203, %v1186, 0.0
        %1232 = vadd.xlane.f32.xlu0 %v1231
        %v1233 = vpop.xlane.xlu0 %1232
        %v1234 = vsel %vm1203, %v1189, 0.0
        %1235 = vadd.xlane.f32.xlu0 %v1234
        %v1236 = vpop.xlane.xlu0 %1235
        %v1237 = vsel %vm1203, %v1191, 0.0
        %1238 = vadd.xlane.f32.xlu0 %v1237
        %v1239 = vpop.xlane.xlu0 %1238
        %v1240 = vsel %vm1203, %v1194, 0.0
        %1241 = vadd.xlane.f32.xlu0 %v1240
        %v1242 = vpop.xlane.xlu0 %1241
        %v1243 = vsel %vm1203, %v1196, 0.0
        %1244 = vadd.xlane.f32.xlu0 %v1243
        %v1245 = vpop.xlane.xlu0 %1244
        %v1246 = vsel %vm1203, %v1199, 0.0
        %1247 = vadd.xlane.f32.xlu0 %v1246
        %v1248 = vpop.xlane.xlu0 %1247
        %v1249 = vsel %vm1203, %v1201, 0.0
        %1250 = vadd.xlane.f32.xlu0 %v1249
        %v1251 = vpop.xlane.xlu0 %1250
        %v1252 = vrcp.pop 32.0
        %v1253 = vmul.f32 32.0, %v1252
        %v1254 = vsub.f32 1.0, %v1253
        %v1255 = vmul.f32 %v1252, %v1254
        %v1256 = vadd.f32 %v1252, %v1255
        %vm1257 = vweird.f32 %v1252
        %v1258 = vsel %vm1257, %v1252, %v1256
        %v1259 = vmul.f32 %v1206, %v1258
        %v1260 = vmul.f32 %v1209, %v1258
        %v1261 = vmul.f32 %v1212, %v1258
        %v1262 = vmul.f32 %v1215, %v1258
        %v1263 = vmul.f32 %v1218, %v1258
        %v1264 = vmul.f32 %v1221, %v1258
        %v1265 = vmul.f32 %v1224, %v1258
        %v1266 = vmul.f32 %v1227, %v1258
        %v1267 = vmul.f32 %v1230, %v1258
        %v1268 = vmul.f32 %v1233, %v1258
        %v1269 = vmul.f32 %v1236, %v1258
        %v1270 = vmul.f32 %v1239, %v1258
        %v1271 = vmul.f32 %v1242, %v1258
        %v1272 = vmul.f32 %v1245, %v1258
        %v1273 = vmul.f32 %v1248, %v1258
        %v1274 = vmul.f32 %v1251, %v1258
        %v1275 = vsub.f32 %v1164, %v1259
        %v1276 = vsub.f32 %v1166, %v1260
        %v1277 = vsub.f32 %v1169, %v1261
        %v1278 = vsub.f32 %v1171, %v1262
        %v1279 = vsub.f32 %v1174, %v1263
        %v1280 = vsub.f32 %v1176, %v1264
        %v1281 = vsub.f32 %v1179, %v1265
        %v1282 = vsub.f32 %v1181, %v1266
        %v1283 = vsub.f32 %v1184, %v1267
        %v1284 = vsub.f32 %v1186, %v1268
        %v1285 = vsub.f32 %v1189, %v1269
        %v1286 = vsub.f32 %v1191, %v1270
        %v1287 = vsub.f32 %v1194, %v1271
        %v1288 = vsub.f32 %v1196, %v1272
        %v1289 = vsub.f32 %v1199, %v1273
        %v1290 = vsub.f32 %v1201, %v1274
        %v1291 = vmul.f32 %v1275, %v1275
        %v1292 = vmul.f32 %v1276, %v1276
        %v1293 = vmul.f32 %v1277, %v1277
        %v1294 = vmul.f32 %v1278, %v1278
        %v1295 = vmul.f32 %v1279, %v1279
        %v1296 = vmul.f32 %v1280, %v1280
        %v1297 = vmul.f32 %v1281, %v1281
        %v1298 = vmul.f32 %v1282, %v1282
        %v1299 = vmul.f32 %v1283, %v1283
        %v1300 = vmul.f32 %v1284, %v1284
        %v1301 = vmul.f32 %v1285, %v1285
        %v1302 = vmul.f32 %v1286, %v1286
        %v1303 = vmul.f32 %v1287, %v1287
        %v1304 = vmul.f32 %v1288, %v1288
        %v1305 = vmul.f32 %v1289, %v1289
        %v1306 = vmul.f32 %v1290, %v1290
        %v1307 = vsel %vm1203, %v1291, 0.0
        %1308 = vadd.xlane.f32.xlu0 %v1307
        %v1309 = vpop.xlane.xlu0 %1308
        %v1310 = vsel %vm1203, %v1292, 0.0
        %1311 = vadd.xlane.f32.xlu0 %v1310
        %v1312 = vpop.xlane.xlu0 %1311
        %v1313 = vsel %vm1203, %v1293, 0.0
        %1314 = vadd.xlane.f32.xlu0 %v1313
        %v1315 = vpop.xlane.xlu0 %1314
        %v1316 = vsel %vm1203, %v1294, 0.0
        %1317 = vadd.xlane.f32.xlu0 %v1316
        %v1318 = vpop.xlane.xlu0 %1317
        %v1319 = vsel %vm1203, %v1295, 0.0
        %1320 = vadd.xlane.f32.xlu0 %v1319
        %v1321 = vpop.xlane.xlu0 %1320
        %v1322 = vsel %vm1203, %v1296, 0.0
        %1323 = vadd.xlane.f32.xlu0 %v1322
        %v1324 = vpop.xlane.xlu0 %1323
        %v1325 = vsel %vm1203, %v1297, 0.0
        %1326 = vadd.xlane.f32.xlu0 %v1325
        %v1327 = vpop.xlane.xlu0 %1326
        %v1328 = vsel %vm1203, %v1298, 0.0
        %1329 = vadd.xlane.f32.xlu0 %v1328
        %v1330 = vpop.xlane.xlu0 %1329
        %v1331 = vsel %vm1203, %v1299, 0.0
        %1332 = vadd.xlane.f32.xlu0 %v1331
        %v1333 = vpop.xlane.xlu0 %1332
        %v1334 = vsel %vm1203, %v1300, 0.0
        %1335 = vadd.xlane.f32.xlu0 %v1334
        %v1336 = vpop.xlane.xlu0 %1335
        %v1337 = vsel %vm1203, %v1301, 0.0
        %1338 = vadd.xlane.f32.xlu0 %v1337
        %v1339 = vpop.xlane.xlu0 %1338
        %v1340 = vsel %vm1203, %v1302, 0.0
        %1341 = vadd.xlane.f32.xlu0 %v1340
        %v1342 = vpop.xlane.xlu0 %1341
        %v1343 = vsel %vm1203, %v1303, 0.0
        %1344 = vadd.xlane.f32.xlu0 %v1343
        %v1345 = vpop.xlane.xlu0 %1344
        %v1346 = vsel %vm1203, %v1304, 0.0
        %1347 = vadd.xlane.f32.xlu0 %v1346
        %v1348 = vpop.xlane.xlu0 %1347
        %v1349 = vsel %vm1203, %v1305, 0.0
        %1350 = vadd.xlane.f32.xlu0 %v1349
        %v1351 = vpop.xlane.xlu0 %1350
        %v1352 = vsel %vm1203, %v1306, 0.0
        %1353 = vadd.xlane.f32.xlu0 %v1352
        %v1354 = vpop.xlane.xlu0 %1353
        %v1355 = vmul.f32 %v1309, %v1258
        %v1356 = vmul.f32 %v1312, %v1258
        %v1357 = vmul.f32 %v1315, %v1258
        %v1358 = vmul.f32 %v1318, %v1258
        %v1359 = vmul.f32 %v1321, %v1258
        %v1360 = vmul.f32 %v1324, %v1258
        %v1361 = vmul.f32 %v1327, %v1258
        %v1362 = vmul.f32 %v1330, %v1258
        %v1363 = vmul.f32 %v1333, %v1258
        %v1364 = vmul.f32 %v1336, %v1258
        %v1365 = vmul.f32 %v1339, %v1258
        %v1366 = vmul.f32 %v1342, %v1258
        %v1367 = vmul.f32 %v1345, %v1258
        %v1368 = vmul.f32 %v1348, %v1258
        %v1369 = vmul.f32 %v1351, %v1258
        %v1370 = vmul.f32 %v1354, %v1258
        %v1371 = vadd.f32 %v1355, 1e-05
        %v1372 = vadd.f32 %v1356, 1e-05
        %v1373 = vadd.f32 %v1357, 1e-05
        %v1374 = vadd.f32 %v1358, 1e-05
        %v1375 = vadd.f32 %v1359, 1e-05
        %v1376 = vadd.f32 %v1360, 1e-05
        %v1377 = vadd.f32 %v1361, 1e-05
        %v1378 = vadd.f32 %v1362, 1e-05
        %v1379 = vadd.f32 %v1363, 1e-05
        %v1380 = vadd.f32 %v1364, 1e-05
        %v1381 = vadd.f32 %v1365, 1e-05
        %v1382 = vadd.f32 %v1366, 1e-05
        %v1383 = vadd.f32 %v1367, 1e-05
        %v1384 = vadd.f32 %v1368, 1e-05
        %v1385 = vadd.f32 %v1369, 1e-05
        %v1386 = vadd.f32 %v1370, 1e-05
        %v1387 = vrsqrt.pop %v1371
        %v1388 = vmul.f32 %v1387, %v1371
        %v1389 = vmul.f32 %v1388, %v1387
        %v1390 = vmul.f32 0.5, %v1389
        %v1391 = vsub.f32 1.5, %v1390
        %v1392 = vmul.f32 %v1387, %v1391
        %vm1393 = vweird.f32 %v1371
        %vm1394 = vweird.f32 %v1387
        %vm1395 = vmor %vm1393, %vm1394
        %v1396 = vsel %vm1395, %v1387, %v1392
        %v1397 = vrsqrt.pop %v1372
        %v1398 = vmul.f32 %v1397, %v1372
        %v1399 = vmul.f32 %v1398, %v1397
        %v1400 = vmul.f32 0.5, %v1399
        %v1401 = vsub.f32 1.5, %v1400
        %v1402 = vmul.f32 %v1397, %v1401
        %vm1403 = vweird.f32 %v1372
        %vm1404 = vweird.f32 %v1397
        %vm1405 = vmor %vm1403, %vm1404
        %v1406 = vsel %vm1405, %v1397, %v1402
        %v1407 = vrsqrt.pop %v1373
        %v1408 = vmul.f32 %v1407, %v1373
        %v1409 = vmul.f32 %v1408, %v1407
        %v1410 = vmul.f32 0.5, %v1409
        %v1411 = vsub.f32 1.5, %v1410
        %v1412 = vmul.f32 %v1407, %v1411
        %vm1413 = vweird.f32 %v1373
        %vm1414 = vweird.f32 %v1407
        %vm1415 = vmor %vm1413, %vm1414
        %v1416 = vsel %vm1415, %v1407, %v1412
        %v1417 = vrsqrt.pop %v1374
        %v1418 = vmul.f32 %v1417, %v1374
        %v1419 = vmul.f32 %v1418, %v1417
        %v1420 = vmul.f32 0.5, %v1419
        %v1421 = vsub.f32 1.5, %v1420
        %v1422 = vmul.f32 %v1417, %v1421
        %vm1423 = vweird.f32 %v1374
        %vm1424 = vweird.f32 %v1417
        %vm1425 = vmor %vm1423, %vm1424
        %v1426 = vsel %vm1425, %v1417, %v1422
        %v1427 = vrsqrt.pop %v1375
        %v1428 = vmul.f32 %v1427, %v1375
        %v1429 = vmul.f32 %v1428, %v1427
        %v1430 = vmul.f32 0.5, %v1429
        %v1431 = vsub.f32 1.5, %v1430
        %v1432 = vmul.f32 %v1427, %v1431
        %vm1433 = vweird.f32 %v1375
        %vm1434 = vweird.f32 %v1427
        %vm1435 = vmor %vm1433, %vm1434
        %v1436 = vsel %vm1435, %v1427, %v1432
        %v1437 = vrsqrt.pop %v1376
        %v1438 = vmul.f32 %v1437, %v1376
        %v1439 = vmul.f32 %v1438, %v1437
        %v1440 = vmul.f32 0.5, %v1439
        %v1441 = vsub.f32 1.5, %v1440
        %v1442 = vmul.f32 %v1437, %v1441
        %vm1443 = vweird.f32 %v1376
        %vm1444 = vweird.f32 %v1437
        %vm1445 = vmor %vm1443, %vm1444
        %v1446 = vsel %vm1445, %v1437, %v1442
        %v1447 = vrsqrt.pop %v1377
        %v1448 = vmul.f32 %v1447, %v1377
        %v1449 = vmul.f32 %v1448, %v1447
        %v1450 = vmul.f32 0.5, %v1449
        %v1451 = vsub.f32 1.5, %v1450
        %v1452 = vmul.f32 %v1447, %v1451
        %vm1453 = vweird.f32 %v1377
        %vm1454 = vweird.f32 %v1447
        %vm1455 = vmor %vm1453, %vm1454
        %v1456 = vsel %vm1455, %v1447, %v1452
        %v1457 = vrsqrt.pop %v1378
        %v1458 = vmul.f32 %v1457, %v1378
        %v1459 = vmul.f32 %v1458, %v1457
        %v1460 = vmul.f32 0.5, %v1459
        %v1461 = vsub.f32 1.5, %v1460
        %v1462 = vmul.f32 %v1457, %v1461
        %vm1463 = vweird.f32 %v1378
        %vm1464 = vweird.f32 %v1457
        %vm1465 = vmor %vm1463, %vm1464
        %v1466 = vsel %vm1465, %v1457, %v1462
        %v1467 = vrsqrt.pop %v1379
        %v1468 = vmul.f32 %v1467, %v1379
        %v1469 = vmul.f32 %v1468, %v1467
        %v1470 = vmul.f32 0.5, %v1469
        %v1471 = vsub.f32 1.5, %v1470
        %v1472 = vmul.f32 %v1467, %v1471
        %vm1473 = vweird.f32 %v1379
        %vm1474 = vweird.f32 %v1467
        %vm1475 = vmor %vm1473, %vm1474
        %v1476 = vsel %vm1475, %v1467, %v1472
        %v1477 = vrsqrt.pop %v1380
        %v1478 = vmul.f32 %v1477, %v1380
        %v1479 = vmul.f32 %v1478, %v1477
        %v1480 = vmul.f32 0.5, %v1479
        %v1481 = vsub.f32 1.5, %v1480
        %v1482 = vmul.f32 %v1477, %v1481
        %vm1483 = vweird.f32 %v1380
        %vm1484 = vweird.f32 %v1477
        %vm1485 = vmor %vm1483, %vm1484
        %v1486 = vsel %vm1485, %v1477, %v1482
        %v1487 = vrsqrt.pop %v1381
        %v1488 = vmul.f32 %v1487, %v1381
        %v1489 = vmul.f32 %v1488, %v1487
        %v1490 = vmul.f32 0.5, %v1489
        %v1491 = vsub.f32 1.5, %v1490
        %v1492 = vmul.f32 %v1487, %v1491
        %vm1493 = vweird.f32 %v1381
        %vm1494 = vweird.f32 %v1487
        %vm1495 = vmor %vm1493, %vm1494
        %v1496 = vsel %vm1495, %v1487, %v1492
        %v1497 = vrsqrt.pop %v1382
        %v1498 = vmul.f32 %v1497, %v1382
        %v1499 = vmul.f32 %v1498, %v1497
        %v1500 = vmul.f32 0.5, %v1499
        %v1501 = vsub.f32 1.5, %v1500
        %v1502 = vmul.f32 %v1497, %v1501
        %vm1503 = vweird.f32 %v1382
        %vm1504 = vweird.f32 %v1497
        %vm1505 = vmor %vm1503, %vm1504
        %v1506 = vsel %vm1505, %v1497, %v1502
        %v1507 = vrsqrt.pop %v1383
        %v1508 = vmul.f32 %v1507, %v1383
        %v1509 = vmul.f32 %v1508, %v1507
        %v1510 = vmul.f32 0.5, %v1509
        %v1511 = vsub.f32 1.5, %v1510
        %v1512 = vmul.f32 %v1507, %v1511
        %vm1513 = vweird.f32 %v1383
        %vm1514 = vweird.f32 %v1507
        %vm1515 = vmor %vm1513, %vm1514
        %v1516 = vsel %vm1515, %v1507, %v1512
        %v1517 = vrsqrt.pop %v1384
        %v1518 = vmul.f32 %v1517, %v1384
        %v1519 = vmul.f32 %v1518, %v1517
        %v1520 = vmul.f32 0.5, %v1519
        %v1521 = vsub.f32 1.5, %v1520
        %v1522 = vmul.f32 %v1517, %v1521
        %vm1523 = vweird.f32 %v1384
        %vm1524 = vweird.f32 %v1517
        %vm1525 = vmor %vm1523, %vm1524
        %v1526 = vsel %vm1525, %v1517, %v1522
        %v1527 = vrsqrt.pop %v1385
        %v1528 = vmul.f32 %v1527, %v1385
        %v1529 = vmul.f32 %v1528, %v1527
        %v1530 = vmul.f32 0.5, %v1529
        %v1531 = vsub.f32 1.5, %v1530
        %v1532 = vmul.f32 %v1527, %v1531
        %vm1533 = vweird.f32 %v1385
        %vm1534 = vweird.f32 %v1527
        %vm1535 = vmor %vm1533, %vm1534
        %v1536 = vsel %vm1535, %v1527, %v1532
        %v1537 = vrsqrt.pop %v1386
        %v1538 = vmul.f32 %v1537, %v1386
        %v1539 = vmul.f32 %v1538, %v1537
        %v1540 = vmul.f32 0.5, %v1539
        %v1541 = vsub.f32 1.5, %v1540
        %v1542 = vmul.f32 %v1537, %v1541
        %vm1543 = vweird.f32 %v1386
        %vm1544 = vweird.f32 %v1537
        %vm1545 = vmor %vm1543, %vm1544
        %v1546 = vsel %vm1545, %v1537, %v1542
        %v1547 = vmul.f32 %v1275, %v1396
        %v1548 = vmul.f32 %v1276, %v1406
        %v1549 = vmul.f32 %v1277, %v1416
        %v1550 = vmul.f32 %v1278, %v1426
        %v1551 = vmul.f32 %v1279, %v1436
        %v1552 = vmul.f32 %v1280, %v1446
        %v1553 = vmul.f32 %v1281, %v1456
        %v1554 = vmul.f32 %v1282, %v1466
        %v1555 = vmul.f32 %v1283, %v1476
        %v1556 = vmul.f32 %v1284, %v1486
        %v1557 = vmul.f32 %v1285, %v1496
        %v1558 = vmul.f32 %v1286, %v1506
        %v1559 = vmul.f32 %v1287, %v1516
        %v1560 = vmul.f32 %v1288, %v1526
        %v1561 = vmul.f32 %v1289, %v1536
        %v1562 = vmul.f32 %v1290, %v1546
        %v1563 = vperm.slane %v445, 5
        %v1564 = vmul.f32 %v1547, %v1563
        %v1565 = vmul.f32 %v1548, %v1563
        %v1566 = vmul.f32 %v1549, %v1563
        %v1567 = vmul.f32 %v1550, %v1563
        %v1568 = vmul.f32 %v1551, %v1563
        %v1569 = vmul.f32 %v1552, %v1563
        %v1570 = vmul.f32 %v1553, %v1563
        %v1571 = vmul.f32 %v1554, %v1563
        %v1572 = vmul.f32 %v1555, %v1563
        %v1573 = vmul.f32 %v1556, %v1563
        %v1574 = vmul.f32 %v1557, %v1563
        %v1575 = vmul.f32 %v1558, %v1563
        %v1576 = vmul.f32 %v1559, %v1563
        %v1577 = vmul.f32 %v1560, %v1563
        %v1578 = vmul.f32 %v1561, %v1563
        %v1579 = vmul.f32 %v1562, %v1563
        %v1580 = vperm.slane %v445, 6
        %v1581 = vadd.f32 %v1564, %v1580
        %v1582 = vadd.f32 %v1565, %v1580
        %v1583 = vadd.f32 %v1566, %v1580
        %v1584 = vadd.f32 %v1567, %v1580
        %v1585 = vadd.f32 %v1568, %v1580
        %v1586 = vadd.f32 %v1569, %v1580
        %v1587 = vadd.f32 %v1570, %v1580
        %v1588 = vadd.f32 %v1571, %v1580
        %v1589 = vadd.f32 %v1572, %v1580
        %v1590 = vadd.f32 %v1573, %v1580
        %v1591 = vadd.f32 %v1574, %v1580
        %v1592 = vadd.f32 %v1575, %v1580
        %v1593 = vadd.f32 %v1576, %v1580
        %v1594 = vadd.f32 %v1577, %v1580
        %v1595 = vadd.f32 %v1578, %v1580
        %v1596 = vadd.f32 %v1579, %v1580
        %1613 = vrot.lane.b32.xlu0 %v1164, 96
        %v1614 = vpop.permute.xlu0 %1613
        %1615 = vrot.lane.b32.xlu0 %v1166, 96
        %v1616 = vpop.permute.xlu0 %1615
        %1617 = vrot.lane.b32.xlu0 %v1169, 96
        %v1618 = vpop.permute.xlu0 %1617
        %1619 = vrot.lane.b32.xlu0 %v1171, 96
        %v1620 = vpop.permute.xlu0 %1619
        %1621 = vrot.lane.b32.xlu0 %v1174, 96
        %v1622 = vpop.permute.xlu0 %1621
        %1623 = vrot.lane.b32.xlu0 %v1176, 96
        %v1624 = vpop.permute.xlu0 %1623
        %1625 = vrot.lane.b32.xlu0 %v1179, 96
        %v1626 = vpop.permute.xlu0 %1625
        %1627 = vrot.lane.b32.xlu0 %v1181, 96
        %v1628 = vpop.permute.xlu0 %1627
        %1629 = vrot.lane.b32.xlu0 %v1184, 96
        %v1630 = vpop.permute.xlu0 %1629
        %1631 = vrot.lane.b32.xlu0 %v1186, 96
        %v1632 = vpop.permute.xlu0 %1631
        %1633 = vrot.lane.b32.xlu0 %v1189, 96
        %v1634 = vpop.permute.xlu0 %1633
        %1635 = vrot.lane.b32.xlu0 %v1191, 96
        %v1636 = vpop.permute.xlu0 %1635
        %1637 = vrot.lane.b32.xlu0 %v1194, 96
        %v1638 = vpop.permute.xlu0 %1637
        %1639 = vrot.lane.b32.xlu0 %v1196, 96
        %v1640 = vpop.permute.xlu0 %1639
        %1641 = vrot.lane.b32.xlu0 %v1199, 96
        %v1642 = vpop.permute.xlu0 %1641
        %1643 = vrot.lane.b32.xlu0 %v1201, 96
        %v1644 = vpop.permute.xlu0 %1643
        %v1661 = vsel %vm1203, %v1614, 0.0
        %1662 = vadd.xlane.f32.xlu0 %v1661
        %v1663 = vpop.xlane.xlu0 %1662
        %v1664 = vsel %vm1203, %v1616, 0.0
        %1665 = vadd.xlane.f32.xlu0 %v1664
        %v1666 = vpop.xlane.xlu0 %1665
        %v1667 = vsel %vm1203, %v1618, 0.0
        %1668 = vadd.xlane.f32.xlu0 %v1667
        %v1669 = vpop.xlane.xlu0 %1668
        %v1670 = vsel %vm1203, %v1620, 0.0
        %1671 = vadd.xlane.f32.xlu0 %v1670
        %v1672 = vpop.xlane.xlu0 %1671
        %v1673 = vsel %vm1203, %v1622, 0.0
        %1674 = vadd.xlane.f32.xlu0 %v1673
        %v1675 = vpop.xlane.xlu0 %1674
        %v1676 = vsel %vm1203, %v1624, 0.0
        %1677 = vadd.xlane.f32.xlu0 %v1676
        %v1678 = vpop.xlane.xlu0 %1677
        %v1679 = vsel %vm1203, %v1626, 0.0
        %1680 = vadd.xlane.f32.xlu0 %v1679
        %v1681 = vpop.xlane.xlu0 %1680
        %v1682 = vsel %vm1203, %v1628, 0.0
        %1683 = vadd.xlane.f32.xlu0 %v1682
        %v1684 = vpop.xlane.xlu0 %1683
        %v1685 = vsel %vm1203, %v1630, 0.0
        %1686 = vadd.xlane.f32.xlu0 %v1685
        %v1687 = vpop.xlane.xlu0 %1686
        %v1688 = vsel %vm1203, %v1632, 0.0
        %1689 = vadd.xlane.f32.xlu0 %v1688
        %v1690 = vpop.xlane.xlu0 %1689
        %v1691 = vsel %vm1203, %v1634, 0.0
        %1692 = vadd.xlane.f32.xlu0 %v1691
        %v1693 = vpop.xlane.xlu0 %1692
        %v1694 = vsel %vm1203, %v1636, 0.0
        %1695 = vadd.xlane.f32.xlu0 %v1694
        %v1696 = vpop.xlane.xlu0 %1695
        %v1697 = vsel %vm1203, %v1638, 0.0
        %1698 = vadd.xlane.f32.xlu0 %v1697
        %v1699 = vpop.xlane.xlu0 %1698
        %v1700 = vsel %vm1203, %v1640, 0.0
        %1701 = vadd.xlane.f32.xlu0 %v1700
        %v1702 = vpop.xlane.xlu0 %1701
        %v1703 = vsel %vm1203, %v1642, 0.0
        %1704 = vadd.xlane.f32.xlu0 %v1703
        %v1705 = vpop.xlane.xlu0 %1704
        %v1706 = vsel %vm1203, %v1644, 0.0
        %1707 = vadd.xlane.f32.xlu0 %v1706
        %v1708 = vpop.xlane.xlu0 %1707
        %v1709 = vmul.f32 %v1663, %v1258
        %v1710 = vmul.f32 %v1666, %v1258
        %v1711 = vmul.f32 %v1669, %v1258
        %v1712 = vmul.f32 %v1672, %v1258
        %v1713 = vmul.f32 %v1675, %v1258
        %v1714 = vmul.f32 %v1678, %v1258
        %v1715 = vmul.f32 %v1681, %v1258
        %v1716 = vmul.f32 %v1684, %v1258
        %v1717 = vmul.f32 %v1687, %v1258
        %v1718 = vmul.f32 %v1690, %v1258
        %v1719 = vmul.f32 %v1693, %v1258
        %v1720 = vmul.f32 %v1696, %v1258
        %v1721 = vmul.f32 %v1699, %v1258
        %v1722 = vmul.f32 %v1702, %v1258
        %v1723 = vmul.f32 %v1705, %v1258
        %v1724 = vmul.f32 %v1708, %v1258
        %v1725 = vsub.f32 %v1164, %v1709
        %v1726 = vsub.f32 %v1166, %v1710
        %v1727 = vsub.f32 %v1169, %v1711
        %v1728 = vsub.f32 %v1171, %v1712
        %v1729 = vsub.f32 %v1174, %v1713
        %v1730 = vsub.f32 %v1176, %v1714
        %v1731 = vsub.f32 %v1179, %v1715
        %v1732 = vsub.f32 %v1181, %v1716
        %v1733 = vsub.f32 %v1184, %v1717
        %v1734 = vsub.f32 %v1186, %v1718
        %v1735 = vsub.f32 %v1189, %v1719
        %v1736 = vsub.f32 %v1191, %v1720
        %v1737 = vsub.f32 %v1194, %v1721
        %v1738 = vsub.f32 %v1196, %v1722
        %v1739 = vsub.f32 %v1199, %v1723
        %v1740 = vsub.f32 %v1201, %v1724
        %v1741 = vmul.f32 %v1725, %v1725
        %v1742 = vmul.f32 %v1726, %v1726
        %v1743 = vmul.f32 %v1727, %v1727
        %v1744 = vmul.f32 %v1728, %v1728
        %v1745 = vmul.f32 %v1729, %v1729
        %v1746 = vmul.f32 %v1730, %v1730
        %v1747 = vmul.f32 %v1731, %v1731
        %v1748 = vmul.f32 %v1732, %v1732
        %v1749 = vmul.f32 %v1733, %v1733
        %v1750 = vmul.f32 %v1734, %v1734
        %v1751 = vmul.f32 %v1735, %v1735
        %v1752 = vmul.f32 %v1736, %v1736
        %v1753 = vmul.f32 %v1737, %v1737
        %v1754 = vmul.f32 %v1738, %v1738
        %v1755 = vmul.f32 %v1739, %v1739
        %v1756 = vmul.f32 %v1740, %v1740
        %1773 = vrot.lane.b32.xlu0 %v1741, 96
        %v1774 = vpop.permute.xlu0 %1773
        %1775 = vrot.lane.b32.xlu0 %v1742, 96
        %v1776 = vpop.permute.xlu0 %1775
        %1777 = vrot.lane.b32.xlu0 %v1743, 96
        %v1778 = vpop.permute.xlu0 %1777
        %1779 = vrot.lane.b32.xlu0 %v1744, 96
        %v1780 = vpop.permute.xlu0 %1779
        %1781 = vrot.lane.b32.xlu0 %v1745, 96
        %v1782 = vpop.permute.xlu0 %1781
        %1783 = vrot.lane.b32.xlu0 %v1746, 96
        %v1784 = vpop.permute.xlu0 %1783
        %1785 = vrot.lane.b32.xlu0 %v1747, 96
        %v1786 = vpop.permute.xlu0 %1785
        %1787 = vrot.lane.b32.xlu0 %v1748, 96
        %v1788 = vpop.permute.xlu0 %1787
        %1789 = vrot.lane.b32.xlu0 %v1749, 96
        %v1790 = vpop.permute.xlu0 %1789
        %1791 = vrot.lane.b32.xlu0 %v1750, 96
        %v1792 = vpop.permute.xlu0 %1791
        %1793 = vrot.lane.b32.xlu0 %v1751, 96
        %v1794 = vpop.permute.xlu0 %1793
        %1795 = vrot.lane.b32.xlu0 %v1752, 96
        %v1796 = vpop.permute.xlu0 %1795
        %1797 = vrot.lane.b32.xlu0 %v1753, 96
        %v1798 = vpop.permute.xlu0 %1797
        %1799 = vrot.lane.b32.xlu0 %v1754, 96
        %v1800 = vpop.permute.xlu0 %1799
        %1801 = vrot.lane.b32.xlu0 %v1755, 96
        %v1802 = vpop.permute.xlu0 %1801
        %1803 = vrot.lane.b32.xlu0 %v1756, 96
        %v1804 = vpop.permute.xlu0 %1803
        %v1821 = vsel %vm1203, %v1774, 0.0
        %1822 = vadd.xlane.f32.xlu0 %v1821
        %v1823 = vpop.xlane.xlu0 %1822
        %v1824 = vsel %vm1203, %v1776, 0.0
        %1825 = vadd.xlane.f32.xlu0 %v1824
        %v1826 = vpop.xlane.xlu0 %1825
        %v1827 = vsel %vm1203, %v1778, 0.0
        %1828 = vadd.xlane.f32.xlu0 %v1827
        %v1829 = vpop.xlane.xlu0 %1828
        %v1830 = vsel %vm1203, %v1780, 0.0
        %1831 = vadd.xlane.f32.xlu0 %v1830
        %v1832 = vpop.xlane.xlu0 %1831
        %v1833 = vsel %vm1203, %v1782, 0.0
        %1834 = vadd.xlane.f32.xlu0 %v1833
        %v1835 = vpop.xlane.xlu0 %1834
        %v1836 = vsel %vm1203, %v1784, 0.0
        %1837 = vadd.xlane.f32.xlu0 %v1836
        %v1838 = vpop.xlane.xlu0 %1837
        %v1839 = vsel %vm1203, %v1786, 0.0
        %1840 = vadd.xlane.f32.xlu0 %v1839
        %v1841 = vpop.xlane.xlu0 %1840
        %v1842 = vsel %vm1203, %v1788, 0.0
        %1843 = vadd.xlane.f32.xlu0 %v1842
        %v1844 = vpop.xlane.xlu0 %1843
        %v1845 = vsel %vm1203, %v1790, 0.0
        %1846 = vadd.xlane.f32.xlu0 %v1845
        %v1847 = vpop.xlane.xlu0 %1846
        %v1848 = vsel %vm1203, %v1792, 0.0
        %1849 = vadd.xlane.f32.xlu0 %v1848
        %v1850 = vpop.xlane.xlu0 %1849
        %v1851 = vsel %vm1203, %v1794, 0.0
        %1852 = vadd.xlane.f32.xlu0 %v1851
        %v1853 = vpop.xlane.xlu0 %1852
        %v1854 = vsel %vm1203, %v1796, 0.0
        %1855 = vadd.xlane.f32.xlu0 %v1854
        %v1856 = vpop.xlane.xlu0 %1855
        %v1857 = vsel %vm1203, %v1798, 0.0
        %1858 = vadd.xlane.f32.xlu0 %v1857
        %v1859 = vpop.xlane.xlu0 %1858
        %v1860 = vsel %vm1203, %v1800, 0.0
        %1861 = vadd.xlane.f32.xlu0 %v1860
        %v1862 = vpop.xlane.xlu0 %1861
        %v1863 = vsel %vm1203, %v1802, 0.0
        %1864 = vadd.xlane.f32.xlu0 %v1863
        %v1865 = vpop.xlane.xlu0 %1864
        %v1866 = vsel %vm1203, %v1804, 0.0
        %1867 = vadd.xlane.f32.xlu0 %v1866
        %v1868 = vpop.xlane.xlu0 %1867
        %v1869 = vmul.f32 %v1823, %v1258
        %v1870 = vmul.f32 %v1826, %v1258
        %v1871 = vmul.f32 %v1829, %v1258
        %v1872 = vmul.f32 %v1832, %v1258
        %v1873 = vmul.f32 %v1835, %v1258
        %v1874 = vmul.f32 %v1838, %v1258
        %v1875 = vmul.f32 %v1841, %v1258
        %v1876 = vmul.f32 %v1844, %v1258
        %v1877 = vmul.f32 %v1847, %v1258
        %v1878 = vmul.f32 %v1850, %v1258
        %v1879 = vmul.f32 %v1853, %v1258
        %v1880 = vmul.f32 %v1856, %v1258
        %v1881 = vmul.f32 %v1859, %v1258
        %v1882 = vmul.f32 %v1862, %v1258
        %v1883 = vmul.f32 %v1865, %v1258
        %v1884 = vmul.f32 %v1868, %v1258
        %v1885 = vadd.f32 %v1869, 1e-05
        %v1886 = vadd.f32 %v1870, 1e-05
        %v1887 = vadd.f32 %v1871, 1e-05
        %v1888 = vadd.f32 %v1872, 1e-05
        %v1889 = vadd.f32 %v1873, 1e-05
        %v1890 = vadd.f32 %v1874, 1e-05
        %v1891 = vadd.f32 %v1875, 1e-05
        %v1892 = vadd.f32 %v1876, 1e-05
        %v1893 = vadd.f32 %v1877, 1e-05
        %v1894 = vadd.f32 %v1878, 1e-05
        %v1895 = vadd.f32 %v1879, 1e-05
        %v1896 = vadd.f32 %v1880, 1e-05
        %v1897 = vadd.f32 %v1881, 1e-05
        %v1898 = vadd.f32 %v1882, 1e-05
        %v1899 = vadd.f32 %v1883, 1e-05
        %v1900 = vadd.f32 %v1884, 1e-05
        %v1901 = vrsqrt.pop %v1885
        %v1902 = vmul.f32 %v1901, %v1885
        %v1903 = vmul.f32 %v1902, %v1901
        %v1904 = vmul.f32 0.5, %v1903
        %v1905 = vsub.f32 1.5, %v1904
        %v1906 = vmul.f32 %v1901, %v1905
        %vm1907 = vweird.f32 %v1885
        %vm1908 = vweird.f32 %v1901
        %vm1909 = vmor %vm1907, %vm1908
        %v1910 = vsel %vm1909, %v1901, %v1906
        %v1911 = vrsqrt.pop %v1886
        %v1912 = vmul.f32 %v1911, %v1886
        %v1913 = vmul.f32 %v1912, %v1911
        %v1914 = vmul.f32 0.5, %v1913
        %v1915 = vsub.f32 1.5, %v1914
        %v1916 = vmul.f32 %v1911, %v1915
        %vm1917 = vweird.f32 %v1886
        %vm1918 = vweird.f32 %v1911
        %vm1919 = vmor %vm1917, %vm1918
        %v1920 = vsel %vm1919, %v1911, %v1916
        %v1921 = vrsqrt.pop %v1887
        %v1922 = vmul.f32 %v1921, %v1887
        %v1923 = vmul.f32 %v1922, %v1921
        %v1924 = vmul.f32 0.5, %v1923
        %v1925 = vsub.f32 1.5, %v1924
        %v1926 = vmul.f32 %v1921, %v1925
        %vm1927 = vweird.f32 %v1887
        %vm1928 = vweird.f32 %v1921
        %vm1929 = vmor %vm1927, %vm1928
        %v1930 = vsel %vm1929, %v1921, %v1926
        %v1931 = vrsqrt.pop %v1888
        %v1932 = vmul.f32 %v1931, %v1888
        %v1933 = vmul.f32 %v1932, %v1931
        %v1934 = vmul.f32 0.5, %v1933
        %v1935 = vsub.f32 1.5, %v1934
        %v1936 = vmul.f32 %v1931, %v1935
        %vm1937 = vweird.f32 %v1888
        %vm1938 = vweird.f32 %v1931
        %vm1939 = vmor %vm1937, %vm1938
        %v1940 = vsel %vm1939, %v1931, %v1936
        %v1941 = vrsqrt.pop %v1889
        %v1942 = vmul.f32 %v1941, %v1889
        %v1943 = vmul.f32 %v1942, %v1941
        %v1944 = vmul.f32 0.5, %v1943
        %v1945 = vsub.f32 1.5, %v1944
        %v1946 = vmul.f32 %v1941, %v1945
        %vm1947 = vweird.f32 %v1889
        %vm1948 = vweird.f32 %v1941
        %vm1949 = vmor %vm1947, %vm1948
        %v1950 = vsel %vm1949, %v1941, %v1946
        %v1951 = vrsqrt.pop %v1890
        %v1952 = vmul.f32 %v1951, %v1890
        %v1953 = vmul.f32 %v1952, %v1951
        %v1954 = vmul.f32 0.5, %v1953
        %v1955 = vsub.f32 1.5, %v1954
        %v1956 = vmul.f32 %v1951, %v1955
        %vm1957 = vweird.f32 %v1890
        %vm1958 = vweird.f32 %v1951
        %vm1959 = vmor %vm1957, %vm1958
        %v1960 = vsel %vm1959, %v1951, %v1956
        %v1961 = vrsqrt.pop %v1891
        %v1962 = vmul.f32 %v1961, %v1891
        %v1963 = vmul.f32 %v1962, %v1961
        %v1964 = vmul.f32 0.5, %v1963
        %v1965 = vsub.f32 1.5, %v1964
        %v1966 = vmul.f32 %v1961, %v1965
        %vm1967 = vweird.f32 %v1891
        %vm1968 = vweird.f32 %v1961
        %vm1969 = vmor %vm1967, %vm1968
        %v1970 = vsel %vm1969, %v1961, %v1966
        %v1971 = vrsqrt.pop %v1892
        %v1972 = vmul.f32 %v1971, %v1892
        %v1973 = vmul.f32 %v1972, %v1971
        %v1974 = vmul.f32 0.5, %v1973
        %v1975 = vsub.f32 1.5, %v1974
        %v1976 = vmul.f32 %v1971, %v1975
        %vm1977 = vweird.f32 %v1892
        %vm1978 = vweird.f32 %v1971
        %vm1979 = vmor %vm1977, %vm1978
        %v1980 = vsel %vm1979, %v1971, %v1976
        %v1981 = vrsqrt.pop %v1893
        %v1982 = vmul.f32 %v1981, %v1893
        %v1983 = vmul.f32 %v1982, %v1981
        %v1984 = vmul.f32 0.5, %v1983
        %v1985 = vsub.f32 1.5, %v1984
        %v1986 = vmul.f32 %v1981, %v1985
        %vm1987 = vweird.f32 %v1893
        %vm1988 = vweird.f32 %v1981
        %vm1989 = vmor %vm1987, %vm1988
        %v1990 = vsel %vm1989, %v1981, %v1986
        %v1991 = vrsqrt.pop %v1894
        %v1992 = vmul.f32 %v1991, %v1894
        %v1993 = vmul.f32 %v1992, %v1991
        %v1994 = vmul.f32 0.5, %v1993
        %v1995 = vsub.f32 1.5, %v1994
        %v1996 = vmul.f32 %v1991, %v1995
        %vm1997 = vweird.f32 %v1894
        %vm1998 = vweird.f32 %v1991
        %vm1999 = vmor %vm1997, %vm1998
        %v2000 = vsel %vm1999, %v1991, %v1996
        %v2001 = vrsqrt.pop %v1895
        %v2002 = vmul.f32 %v2001, %v1895
        %v2003 = vmul.f32 %v2002, %v2001
        %v2004 = vmul.f32 0.5, %v2003
        %v2005 = vsub.f32 1.5, %v2004
        %v2006 = vmul.f32 %v2001, %v2005
        %vm2007 = vweird.f32 %v1895
        %vm2008 = vweird.f32 %v2001
        %vm2009 = vmor %vm2007, %vm2008
        %v2010 = vsel %vm2009, %v2001, %v2006
        %v2011 = vrsqrt.pop %v1896
        %v2012 = vmul.f32 %v2011, %v1896
        %v2013 = vmul.f32 %v2012, %v2011
        %v2014 = vmul.f32 0.5, %v2013
        %v2015 = vsub.f32 1.5, %v2014
        %v2016 = vmul.f32 %v2011, %v2015
        %vm2017 = vweird.f32 %v1896
        %vm2018 = vweird.f32 %v2011
        %vm2019 = vmor %vm2017, %vm2018
        %v2020 = vsel %vm2019, %v2011, %v2016
        %v2021 = vrsqrt.pop %v1897
        %v2022 = vmul.f32 %v2021, %v1897
        %v2023 = vmul.f32 %v2022, %v2021
        %v2024 = vmul.f32 0.5, %v2023
        %v2025 = vsub.f32 1.5, %v2024
        %v2026 = vmul.f32 %v2021, %v2025
        %vm2027 = vweird.f32 %v1897
        %vm2028 = vweird.f32 %v2021
        %vm2029 = vmor %vm2027, %vm2028
        %v2030 = vsel %vm2029, %v2021, %v2026
        %v2031 = vrsqrt.pop %v1898
        %v2032 = vmul.f32 %v2031, %v1898
        %v2033 = vmul.f32 %v2032, %v2031
        %v2034 = vmul.f32 0.5, %v2033
        %v2035 = vsub.f32 1.5, %v2034
        %v2036 = vmul.f32 %v2031, %v2035
        %vm2037 = vweird.f32 %v1898
        %vm2038 = vweird.f32 %v2031
        %vm2039 = vmor %vm2037, %vm2038
        %v2040 = vsel %vm2039, %v2031, %v2036
        %v2041 = vrsqrt.pop %v1899
        %v2042 = vmul.f32 %v2041, %v1899
        %v2043 = vmul.f32 %v2042, %v2041
        %v2044 = vmul.f32 0.5, %v2043
        %v2045 = vsub.f32 1.5, %v2044
        %v2046 = vmul.f32 %v2041, %v2045
        %vm2047 = vweird.f32 %v1899
        %vm2048 = vweird.f32 %v2041
        %vm2049 = vmor %vm2047, %vm2048
        %v2050 = vsel %vm2049, %v2041, %v2046
        %v2051 = vrsqrt.pop %v1900
        %v2052 = vmul.f32 %v2051, %v1900
        %v2053 = vmul.f32 %v2052, %v2051
        %v2054 = vmul.f32 0.5, %v2053
        %v2055 = vsub.f32 1.5, %v2054
        %v2056 = vmul.f32 %v2051, %v2055
        %vm2057 = vweird.f32 %v1900
        %vm2058 = vweird.f32 %v2051
        %vm2059 = vmor %vm2057, %vm2058
        %v2060 = vsel %vm2059, %v2051, %v2056
        %v2061 = vmul.f32 %v1725, %v1910
        %v2062 = vmul.f32 %v1726, %v1920
        %v2063 = vmul.f32 %v1727, %v1930
        %v2064 = vmul.f32 %v1728, %v1940
        %v2065 = vmul.f32 %v1729, %v1950
        %v2066 = vmul.f32 %v1730, %v1960
        %v2067 = vmul.f32 %v1731, %v1970
        %v2068 = vmul.f32 %v1732, %v1980
        %v2069 = vmul.f32 %v1733, %v1990
        %v2070 = vmul.f32 %v1734, %v2000
        %v2071 = vmul.f32 %v1735, %v2010
        %v2072 = vmul.f32 %v1736, %v2020
        %v2073 = vmul.f32 %v1737, %v2030
        %v2074 = vmul.f32 %v1738, %v2040
        %v2075 = vmul.f32 %v1739, %v2050
        %v2076 = vmul.f32 %v1740, %v2060
        %v2077 = vmul.f32 %v2061, %v1563
        %v2078 = vmul.f32 %v2062, %v1563
        %v2079 = vmul.f32 %v2063, %v1563
        %v2080 = vmul.f32 %v2064, %v1563
        %v2081 = vmul.f32 %v2065, %v1563
        %v2082 = vmul.f32 %v2066, %v1563
        %v2083 = vmul.f32 %v2067, %v1563
        %v2084 = vmul.f32 %v2068, %v1563
        %v2085 = vmul.f32 %v2069, %v1563
        %v2086 = vmul.f32 %v2070, %v1563
        %v2087 = vmul.f32 %v2071, %v1563
        %v2088 = vmul.f32 %v2072, %v1563
        %v2089 = vmul.f32 %v2073, %v1563
        %v2090 = vmul.f32 %v2074, %v1563
        %v2091 = vmul.f32 %v2075, %v1563
        %v2092 = vmul.f32 %v2076, %v1563
        %v2093 = vadd.f32 %v2077, %v1580
        %v2094 = vadd.f32 %v2078, %v1580
        %v2095 = vadd.f32 %v2079, %v1580
        %v2096 = vadd.f32 %v2080, %v1580
        %v2097 = vadd.f32 %v2081, %v1580
        %v2098 = vadd.f32 %v2082, %v1580
        %v2099 = vadd.f32 %v2083, %v1580
        %v2100 = vadd.f32 %v2084, %v1580
        %v2101 = vadd.f32 %v2085, %v1580
        %v2102 = vadd.f32 %v2086, %v1580
        %v2103 = vadd.f32 %v2087, %v1580
        %v2104 = vadd.f32 %v2088, %v1580
        %v2105 = vadd.f32 %v2089, %v1580
        %v2106 = vadd.f32 %v2090, %v1580
        %v2107 = vadd.f32 %v2091, %v1580
        %v2108 = vadd.f32 %v2092, %v1580
        %2125 = vrot.lane.b32.xlu0 %v2093, 96
        %v2126 = vpop.permute.xlu0 %2125
        %2127 = vrot.lane.b32.xlu0 %v2094, 96
        %v2128 = vpop.permute.xlu0 %2127
        %2129 = vrot.lane.b32.xlu0 %v2095, 96
        %v2130 = vpop.permute.xlu0 %2129
        %2131 = vrot.lane.b32.xlu0 %v2096, 96
        %v2132 = vpop.permute.xlu0 %2131
        %2133 = vrot.lane.b32.xlu0 %v2097, 96
        %v2134 = vpop.permute.xlu0 %2133
        %2135 = vrot.lane.b32.xlu0 %v2098, 96
        %v2136 = vpop.permute.xlu0 %2135
        %2137 = vrot.lane.b32.xlu0 %v2099, 96
        %v2138 = vpop.permute.xlu0 %2137
        %2139 = vrot.lane.b32.xlu0 %v2100, 96
        %v2140 = vpop.permute.xlu0 %2139
        %2141 = vrot.lane.b32.xlu0 %v2101, 96
        %v2142 = vpop.permute.xlu0 %2141
        %2143 = vrot.lane.b32.xlu0 %v2102, 96
        %v2144 = vpop.permute.xlu0 %2143
        %2145 = vrot.lane.b32.xlu0 %v2103, 96
        %v2146 = vpop.permute.xlu0 %2145
        %2147 = vrot.lane.b32.xlu0 %v2104, 96
        %v2148 = vpop.permute.xlu0 %2147
        %2149 = vrot.lane.b32.xlu0 %v2105, 96
        %v2150 = vpop.permute.xlu0 %2149
        %2151 = vrot.lane.b32.xlu0 %v2106, 96
        %v2152 = vpop.permute.xlu0 %2151
        %2153 = vrot.lane.b32.xlu0 %v2107, 96
        %v2154 = vpop.permute.xlu0 %2153
        %2155 = vrot.lane.b32.xlu0 %v2108, 96
        %v2156 = vpop.permute.xlu0 %2155
        %v2173 = vmul.f32 %v1581, %v2126
        %v2174 = vmul.f32 %v1582, %v2128
        %v2175 = vmul.f32 %v1583, %v2130
        %v2176 = vmul.f32 %v1584, %v2132
        %v2177 = vmul.f32 %v1585, %v2134
        %v2178 = vmul.f32 %v1586, %v2136
        %v2179 = vmul.f32 %v1587, %v2138
        %v2180 = vmul.f32 %v1588, %v2140
        %v2181 = vmul.f32 %v1589, %v2142
        %v2182 = vmul.f32 %v1590, %v2144
        %v2183 = vmul.f32 %v1591, %v2146
        %v2184 = vmul.f32 %v1592, %v2148
        %v2185 = vmul.f32 %v1593, %v2150
        %v2186 = vmul.f32 %v1594, %v2152
        %v2187 = vmul.f32 %v1595, %v2154
        %v2188 = vmul.f32 %v1596, %v2156
        %v2189 = vsel %vm1203, %v2173, 0.0
        %2190 = vadd.xlane.f32.xlu0 %v2189
        %v2191 = vpop.xlane.xlu0 %2190
        %v2192 = vsel %vm1203, %v2174, 0.0
        %2193 = vadd.xlane.f32.xlu0 %v2192
        %v2194 = vpop.xlane.xlu0 %2193
        %v2195 = vsel %vm1203, %v2175, 0.0
        %2196 = vadd.xlane.f32.xlu0 %v2195
        %v2197 = vpop.xlane.xlu0 %2196
        %v2198 = vsel %vm1203, %v2176, 0.0
        %2199 = vadd.xlane.f32.xlu0 %v2198
        %v2200 = vpop.xlane.xlu0 %2199
        %v2201 = vsel %vm1203, %v2177, 0.0
        %2202 = vadd.xlane.f32.xlu0 %v2201
        %v2203 = vpop.xlane.xlu0 %2202
        %v2204 = vsel %vm1203, %v2178, 0.0
        %2205 = vadd.xlane.f32.xlu0 %v2204
        %v2206 = vpop.xlane.xlu0 %2205
        %v2207 = vsel %vm1203, %v2179, 0.0
        %2208 = vadd.xlane.f32.xlu0 %v2207
        %v2209 = vpop.xlane.xlu0 %2208
        %v2210 = vsel %vm1203, %v2180, 0.0
        %2211 = vadd.xlane.f32.xlu0 %v2210
        %v2212 = vpop.xlane.xlu0 %2211
        %v2213 = vsel %vm1203, %v2181, 0.0
        %2214 = vadd.xlane.f32.xlu0 %v2213
        %v2215 = vpop.xlane.xlu0 %2214
        %v2216 = vsel %vm1203, %v2182, 0.0
        %2217 = vadd.xlane.f32.xlu0 %v2216
        %v2218 = vpop.xlane.xlu0 %2217
        %v2219 = vsel %vm1203, %v2183, 0.0
        %2220 = vadd.xlane.f32.xlu0 %v2219
        %v2221 = vpop.xlane.xlu0 %2220
        %v2222 = vsel %vm1203, %v2184, 0.0
        %2223 = vadd.xlane.f32.xlu0 %v2222
        %v2224 = vpop.xlane.xlu0 %2223
        %v2225 = vsel %vm1203, %v2185, 0.0
        %2226 = vadd.xlane.f32.xlu0 %v2225
        %v2227 = vpop.xlane.xlu0 %2226
        %v2228 = vsel %vm1203, %v2186, 0.0
        %2229 = vadd.xlane.f32.xlu0 %v2228
        %v2230 = vpop.xlane.xlu0 %2229
        %v2231 = vsel %vm1203, %v2187, 0.0
        %2232 = vadd.xlane.f32.xlu0 %v2231
        %v2233 = vpop.xlane.xlu0 %2232
        %v2234 = vsel %vm1203, %v2188, 0.0
        %2235 = vadd.xlane.f32.xlu0 %v2234
        %v2236 = vpop.xlane.xlu0 %2235
        %v2237 = vmul.f32 %v1581, %v1581
        %v2238 = vmul.f32 %v1582, %v1582
        %v2239 = vmul.f32 %v1583, %v1583
        %v2240 = vmul.f32 %v1584, %v1584
        %v2241 = vmul.f32 %v1585, %v1585
        %v2242 = vmul.f32 %v1586, %v1586
        %v2243 = vmul.f32 %v1587, %v1587
        %v2244 = vmul.f32 %v1588, %v1588
        %v2245 = vmul.f32 %v1589, %v1589
        %v2246 = vmul.f32 %v1590, %v1590
        %v2247 = vmul.f32 %v1591, %v1591
        %v2248 = vmul.f32 %v1592, %v1592
        %v2249 = vmul.f32 %v1593, %v1593
        %v2250 = vmul.f32 %v1594, %v1594
        %v2251 = vmul.f32 %v1595, %v1595
        %v2252 = vmul.f32 %v1596, %v1596
        %v2253 = vsel %vm1203, %v2237, 0.0
        %2254 = vadd.xlane.f32.xlu0 %v2253
        %v2255 = vpop.xlane.xlu0 %2254
        %v2256 = vsel %vm1203, %v2238, 0.0
        %2257 = vadd.xlane.f32.xlu0 %v2256
        %v2258 = vpop.xlane.xlu0 %2257
        %v2259 = vsel %vm1203, %v2239, 0.0
        %2260 = vadd.xlane.f32.xlu0 %v2259
        %v2261 = vpop.xlane.xlu0 %2260
        %v2262 = vsel %vm1203, %v2240, 0.0
        %2263 = vadd.xlane.f32.xlu0 %v2262
        %v2264 = vpop.xlane.xlu0 %2263
        %v2265 = vsel %vm1203, %v2241, 0.0
        %2266 = vadd.xlane.f32.xlu0 %v2265
        %v2267 = vpop.xlane.xlu0 %2266
        %v2268 = vsel %vm1203, %v2242, 0.0
        %2269 = vadd.xlane.f32.xlu0 %v2268
        %v2270 = vpop.xlane.xlu0 %2269
        %v2271 = vsel %vm1203, %v2243, 0.0
        %2272 = vadd.xlane.f32.xlu0 %v2271
        %v2273 = vpop.xlane.xlu0 %2272
        %v2274 = vsel %vm1203, %v2244, 0.0
        %2275 = vadd.xlane.f32.xlu0 %v2274
        %v2276 = vpop.xlane.xlu0 %2275
        %v2277 = vsel %vm1203, %v2245, 0.0
        %2278 = vadd.xlane.f32.xlu0 %v2277
        %v2279 = vpop.xlane.xlu0 %2278
        %v2280 = vsel %vm1203, %v2246, 0.0
        %2281 = vadd.xlane.f32.xlu0 %v2280
        %v2282 = vpop.xlane.xlu0 %2281
        %v2283 = vsel %vm1203, %v2247, 0.0
        %2284 = vadd.xlane.f32.xlu0 %v2283
        %v2285 = vpop.xlane.xlu0 %2284
        %v2286 = vsel %vm1203, %v2248, 0.0
        %2287 = vadd.xlane.f32.xlu0 %v2286
        %v2288 = vpop.xlane.xlu0 %2287
        %v2289 = vsel %vm1203, %v2249, 0.0
        %2290 = vadd.xlane.f32.xlu0 %v2289
        %v2291 = vpop.xlane.xlu0 %2290
        %v2292 = vsel %vm1203, %v2250, 0.0
        %2293 = vadd.xlane.f32.xlu0 %v2292
        %v2294 = vpop.xlane.xlu0 %2293
        %v2295 = vsel %vm1203, %v2251, 0.0
        %2296 = vadd.xlane.f32.xlu0 %v2295
        %v2297 = vpop.xlane.xlu0 %2296
        %v2298 = vsel %vm1203, %v2252, 0.0
        %2299 = vadd.xlane.f32.xlu0 %v2298
        %v2300 = vpop.xlane.xlu0 %2299
        %v2301 = vmul.f32 %v2093, %v2093
        %v2302 = vmul.f32 %v2094, %v2094
        %v2303 = vmul.f32 %v2095, %v2095
        %v2304 = vmul.f32 %v2096, %v2096
        %v2305 = vmul.f32 %v2097, %v2097
        %v2306 = vmul.f32 %v2098, %v2098
        %v2307 = vmul.f32 %v2099, %v2099
        %v2308 = vmul.f32 %v2100, %v2100
        %v2309 = vmul.f32 %v2101, %v2101
        %v2310 = vmul.f32 %v2102, %v2102
        %v2311 = vmul.f32 %v2103, %v2103
        %v2312 = vmul.f32 %v2104, %v2104
        %v2313 = vmul.f32 %v2105, %v2105
        %v2314 = vmul.f32 %v2106, %v2106
        %v2315 = vmul.f32 %v2107, %v2107
        %v2316 = vmul.f32 %v2108, %v2108
        %2333 = vrot.lane.b32.xlu0 %v2301, 96
        %v2334 = vpop.permute.xlu0 %2333
        %2335 = vrot.lane.b32.xlu0 %v2302, 96
        %v2336 = vpop.permute.xlu0 %2335
        %2337 = vrot.lane.b32.xlu0 %v2303, 96
        %v2338 = vpop.permute.xlu0 %2337
        %2339 = vrot.lane.b32.xlu0 %v2304, 96
        %v2340 = vpop.permute.xlu0 %2339
        %2341 = vrot.lane.b32.xlu0 %v2305, 96
        %v2342 = vpop.permute.xlu0 %2341
        %2343 = vrot.lane.b32.xlu0 %v2306, 96
        %v2344 = vpop.permute.xlu0 %2343
        %2345 = vrot.lane.b32.xlu0 %v2307, 96
        %v2346 = vpop.permute.xlu0 %2345
        %2347 = vrot.lane.b32.xlu0 %v2308, 96
        %v2348 = vpop.permute.xlu0 %2347
        %2349 = vrot.lane.b32.xlu0 %v2309, 96
        %v2350 = vpop.permute.xlu0 %2349
        %2351 = vrot.lane.b32.xlu0 %v2310, 96
        %v2352 = vpop.permute.xlu0 %2351
        %2353 = vrot.lane.b32.xlu0 %v2311, 96
        %v2354 = vpop.permute.xlu0 %2353
        %2355 = vrot.lane.b32.xlu0 %v2312, 96
        %v2356 = vpop.permute.xlu0 %2355
        %2357 = vrot.lane.b32.xlu0 %v2313, 96
        %v2358 = vpop.permute.xlu0 %2357
        %2359 = vrot.lane.b32.xlu0 %v2314, 96
        %v2360 = vpop.permute.xlu0 %2359
        %2361 = vrot.lane.b32.xlu0 %v2315, 96
        %v2362 = vpop.permute.xlu0 %2361
        %2363 = vrot.lane.b32.xlu0 %v2316, 96
        %v2364 = vpop.permute.xlu0 %2363
        %v2381 = vsel %vm1203, %v2334, 0.0
        %2382 = vadd.xlane.f32.xlu0 %v2381
        %v2383 = vpop.xlane.xlu0 %2382
        %v2384 = vsel %vm1203, %v2336, 0.0
        %2385 = vadd.xlane.f32.xlu0 %v2384
        %v2386 = vpop.xlane.xlu0 %2385
        %v2387 = vsel %vm1203, %v2338, 0.0
        %2388 = vadd.xlane.f32.xlu0 %v2387
        %v2389 = vpop.xlane.xlu0 %2388
        %v2390 = vsel %vm1203, %v2340, 0.0
        %2391 = vadd.xlane.f32.xlu0 %v2390
        %v2392 = vpop.xlane.xlu0 %2391
        %v2393 = vsel %vm1203, %v2342, 0.0
        %2394 = vadd.xlane.f32.xlu0 %v2393
        %v2395 = vpop.xlane.xlu0 %2394
        %v2396 = vsel %vm1203, %v2344, 0.0
        %2397 = vadd.xlane.f32.xlu0 %v2396
        %v2398 = vpop.xlane.xlu0 %2397
        %v2399 = vsel %vm1203, %v2346, 0.0
        %2400 = vadd.xlane.f32.xlu0 %v2399
        %v2401 = vpop.xlane.xlu0 %2400
        %v2402 = vsel %vm1203, %v2348, 0.0
        %2403 = vadd.xlane.f32.xlu0 %v2402
        %v2404 = vpop.xlane.xlu0 %2403
        %v2405 = vsel %vm1203, %v2350, 0.0
        %2406 = vadd.xlane.f32.xlu0 %v2405
        %v2407 = vpop.xlane.xlu0 %2406
        %v2408 = vsel %vm1203, %v2352, 0.0
        %2409 = vadd.xlane.f32.xlu0 %v2408
        %v2410 = vpop.xlane.xlu0 %2409
        %v2411 = vsel %vm1203, %v2354, 0.0
        %2412 = vadd.xlane.f32.xlu0 %v2411
        %v2413 = vpop.xlane.xlu0 %2412
        %v2414 = vsel %vm1203, %v2356, 0.0
        %2415 = vadd.xlane.f32.xlu0 %v2414
        %v2416 = vpop.xlane.xlu0 %2415
        %v2417 = vsel %vm1203, %v2358, 0.0
        %2418 = vadd.xlane.f32.xlu0 %v2417
        %v2419 = vpop.xlane.xlu0 %2418
        %v2420 = vsel %vm1203, %v2360, 0.0
        %2421 = vadd.xlane.f32.xlu0 %v2420
        %v2422 = vpop.xlane.xlu0 %2421
        %v2423 = vsel %vm1203, %v2362, 0.0
        %2424 = vadd.xlane.f32.xlu0 %v2423
        %v2425 = vpop.xlane.xlu0 %2424
        %v2426 = vsel %vm1203, %v2364, 0.0
        %2427 = vadd.xlane.f32.xlu0 %v2426
        %v2428 = vpop.xlane.xlu0 %2427
        %v2429 = vmax.f32 %v2255, 1e-24
        %v2430 = vmax.f32 %v2258, 1e-24
        %v2431 = vmax.f32 %v2261, 1e-24
        %v2432 = vmax.f32 %v2264, 1e-24
        %v2433 = vmax.f32 %v2267, 1e-24
        %v2434 = vmax.f32 %v2270, 1e-24
        %v2435 = vmax.f32 %v2273, 1e-24
        %v2436 = vmax.f32 %v2276, 1e-24
        %v2437 = vmax.f32 %v2279, 1e-24
        %v2438 = vmax.f32 %v2282, 1e-24
        %v2439 = vmax.f32 %v2285, 1e-24
        %v2440 = vmax.f32 %v2288, 1e-24
        %v2441 = vmax.f32 %v2291, 1e-24
        %v2442 = vmax.f32 %v2294, 1e-24
        %v2443 = vmax.f32 %v2297, 1e-24
        %v2444 = vmax.f32 %v2300, 1e-24
        %v2445 = vmax.f32 %v2383, 1e-24
        %v2446 = vmax.f32 %v2386, 1e-24
        %v2447 = vmax.f32 %v2389, 1e-24
        %v2448 = vmax.f32 %v2392, 1e-24
        %v2449 = vmax.f32 %v2395, 1e-24
        %v2450 = vmax.f32 %v2398, 1e-24
        %v2451 = vmax.f32 %v2401, 1e-24
        %v2452 = vmax.f32 %v2404, 1e-24
        %v2453 = vmax.f32 %v2407, 1e-24
        %v2454 = vmax.f32 %v2410, 1e-24
        %v2455 = vmax.f32 %v2413, 1e-24
        %v2456 = vmax.f32 %v2416, 1e-24
        %v2457 = vmax.f32 %v2419, 1e-24
        %v2458 = vmax.f32 %v2422, 1e-24
        %v2459 = vmax.f32 %v2425, 1e-24
        %v2460 = vmax.f32 %v2428, 1e-24
        %v2461 = vmul.f32 %v2429, %v2445
        %v2462 = vmul.f32 %v2430, %v2446
        %v2463 = vmul.f32 %v2431, %v2447
        %v2464 = vmul.f32 %v2432, %v2448
        %v2465 = vmul.f32 %v2433, %v2449
        %v2466 = vmul.f32 %v2434, %v2450
        %v2467 = vmul.f32 %v2435, %v2451
        %v2468 = vmul.f32 %v2436, %v2452
        %v2469 = vmul.f32 %v2437, %v2453
        %v2470 = vmul.f32 %v2438, %v2454
        %v2471 = vmul.f32 %v2439, %v2455
        %v2472 = vmul.f32 %v2440, %v2456
        %v2473 = vmul.f32 %v2441, %v2457
        %v2474 = vmul.f32 %v2442, %v2458
        %v2475 = vmul.f32 %v2443, %v2459
        %v2476 = vmul.f32 %v2444, %v2460
        %v2477 = vstv %s446
        %v2478 = vmul.f32 %v2191, %v2477
        %v2479 = vmul.f32 %v2194, %v2477
        %v2480 = vmul.f32 %v2197, %v2477
        %v2481 = vmul.f32 %v2200, %v2477
        %v2482 = vmul.f32 %v2203, %v2477
        %v2483 = vmul.f32 %v2206, %v2477
        %v2484 = vmul.f32 %v2209, %v2477
        %v2485 = vmul.f32 %v2212, %v2477
        %v2486 = vmul.f32 %v2215, %v2477
        %v2487 = vmul.f32 %v2218, %v2477
        %v2488 = vmul.f32 %v2221, %v2477
        %v2489 = vmul.f32 %v2224, %v2477
        %v2490 = vmul.f32 %v2227, %v2477
        %v2491 = vmul.f32 %v2230, %v2477
        %v2492 = vmul.f32 %v2233, %v2477
        %v2493 = vmul.f32 %v2236, %v2477
        %v2494 = vrsqrt.pop %v2461
        %v2495 = vmul.f32 %v2494, %v2461
        %v2496 = vmul.f32 %v2495, %v2494
        %v2497 = vmul.f32 0.5, %v2496
        %v2498 = vsub.f32 1.5, %v2497
        %v2499 = vmul.f32 %v2494, %v2498
        %vm2500 = vweird.f32 %v2461
        %vm2501 = vweird.f32 %v2494
        %vm2502 = vmor %vm2500, %vm2501
        %v2503 = vsel %vm2502, %v2494, %v2499
        %v2504 = vrsqrt.pop %v2462
        %v2505 = vmul.f32 %v2504, %v2462
        %v2506 = vmul.f32 %v2505, %v2504
        %v2507 = vmul.f32 0.5, %v2506
        %v2508 = vsub.f32 1.5, %v2507
        %v2509 = vmul.f32 %v2504, %v2508
        %vm2510 = vweird.f32 %v2462
        %vm2511 = vweird.f32 %v2504
        %vm2512 = vmor %vm2510, %vm2511
        %v2513 = vsel %vm2512, %v2504, %v2509
        %v2514 = vrsqrt.pop %v2463
        %v2515 = vmul.f32 %v2514, %v2463
        %v2516 = vmul.f32 %v2515, %v2514
        %v2517 = vmul.f32 0.5, %v2516
        %v2518 = vsub.f32 1.5, %v2517
        %v2519 = vmul.f32 %v2514, %v2518
        %vm2520 = vweird.f32 %v2463
        %vm2521 = vweird.f32 %v2514
        %vm2522 = vmor %vm2520, %vm2521
        %v2523 = vsel %vm2522, %v2514, %v2519
        %v2524 = vrsqrt.pop %v2464
        %v2525 = vmul.f32 %v2524, %v2464
        %v2526 = vmul.f32 %v2525, %v2524
        %v2527 = vmul.f32 0.5, %v2526
        %v2528 = vsub.f32 1.5, %v2527
        %v2529 = vmul.f32 %v2524, %v2528
        %vm2530 = vweird.f32 %v2464
        %vm2531 = vweird.f32 %v2524
        %vm2532 = vmor %vm2530, %vm2531
        %v2533 = vsel %vm2532, %v2524, %v2529
        %v2534 = vrsqrt.pop %v2465
        %v2535 = vmul.f32 %v2534, %v2465
        %v2536 = vmul.f32 %v2535, %v2534
        %v2537 = vmul.f32 0.5, %v2536
        %v2538 = vsub.f32 1.5, %v2537
        %v2539 = vmul.f32 %v2534, %v2538
        %vm2540 = vweird.f32 %v2465
        %vm2541 = vweird.f32 %v2534
        %vm2542 = vmor %vm2540, %vm2541
        %v2543 = vsel %vm2542, %v2534, %v2539
        %v2544 = vrsqrt.pop %v2466
        %v2545 = vmul.f32 %v2544, %v2466
        %v2546 = vmul.f32 %v2545, %v2544
        %v2547 = vmul.f32 0.5, %v2546
        %v2548 = vsub.f32 1.5, %v2547
        %v2549 = vmul.f32 %v2544, %v2548
        %vm2550 = vweird.f32 %v2466
        %vm2551 = vweird.f32 %v2544
        %vm2552 = vmor %vm2550, %vm2551
        %v2553 = vsel %vm2552, %v2544, %v2549
        %v2554 = vrsqrt.pop %v2467
        %v2555 = vmul.f32 %v2554, %v2467
        %v2556 = vmul.f32 %v2555, %v2554
        %v2557 = vmul.f32 0.5, %v2556
        %v2558 = vsub.f32 1.5, %v2557
        %v2559 = vmul.f32 %v2554, %v2558
        %vm2560 = vweird.f32 %v2467
        %vm2561 = vweird.f32 %v2554
        %vm2562 = vmor %vm2560, %vm2561
        %v2563 = vsel %vm2562, %v2554, %v2559
        %v2564 = vrsqrt.pop %v2468
        %v2565 = vmul.f32 %v2564, %v2468
        %v2566 = vmul.f32 %v2565, %v2564
        %v2567 = vmul.f32 0.5, %v2566
        %v2568 = vsub.f32 1.5, %v2567
        %v2569 = vmul.f32 %v2564, %v2568
        %vm2570 = vweird.f32 %v2468
        %vm2571 = vweird.f32 %v2564
        %vm2572 = vmor %vm2570, %vm2571
        %v2573 = vsel %vm2572, %v2564, %v2569
        %v2574 = vrsqrt.pop %v2469
        %v2575 = vmul.f32 %v2574, %v2469
        %v2576 = vmul.f32 %v2575, %v2574
        %v2577 = vmul.f32 0.5, %v2576
        %v2578 = vsub.f32 1.5, %v2577
        %v2579 = vmul.f32 %v2574, %v2578
        %vm2580 = vweird.f32 %v2469
        %vm2581 = vweird.f32 %v2574
        %vm2582 = vmor %vm2580, %vm2581
        %v2583 = vsel %vm2582, %v2574, %v2579
        %v2584 = vrsqrt.pop %v2470
        %v2585 = vmul.f32 %v2584, %v2470
        %v2586 = vmul.f32 %v2585, %v2584
        %v2587 = vmul.f32 0.5, %v2586
        %v2588 = vsub.f32 1.5, %v2587
        %v2589 = vmul.f32 %v2584, %v2588
        %vm2590 = vweird.f32 %v2470
        %vm2591 = vweird.f32 %v2584
        %vm2592 = vmor %vm2590, %vm2591
        %v2593 = vsel %vm2592, %v2584, %v2589
        %v2594 = vrsqrt.pop %v2471
        %v2595 = vmul.f32 %v2594, %v2471
        %v2596 = vmul.f32 %v2595, %v2594
        %v2597 = vmul.f32 0.5, %v2596
        %v2598 = vsub.f32 1.5, %v2597
        %v2599 = vmul.f32 %v2594, %v2598
        %vm2600 = vweird.f32 %v2471
        %vm2601 = vweird.f32 %v2594
        %vm2602 = vmor %vm2600, %vm2601
        %v2603 = vsel %vm2602, %v2594, %v2599
        %v2604 = vrsqrt.pop %v2472
        %v2605 = vmul.f32 %v2604, %v2472
        %v2606 = vmul.f32 %v2605, %v2604
        %v2607 = vmul.f32 0.5, %v2606
        %v2608 = vsub.f32 1.5, %v2607
        %v2609 = vmul.f32 %v2604, %v2608
        %vm2610 = vweird.f32 %v2472
        %vm2611 = vweird.f32 %v2604
        %vm2612 = vmor %vm2610, %vm2611
        %v2613 = vsel %vm2612, %v2604, %v2609
        %v2614 = vrsqrt.pop %v2473
        %v2615 = vmul.f32 %v2614, %v2473
        %v2616 = vmul.f32 %v2615, %v2614
        %v2617 = vmul.f32 0.5, %v2616
        %v2618 = vsub.f32 1.5, %v2617
        %v2619 = vmul.f32 %v2614, %v2618
        %vm2620 = vweird.f32 %v2473
        %vm2621 = vweird.f32 %v2614
        %vm2622 = vmor %vm2620, %vm2621
        %v2623 = vsel %vm2622, %v2614, %v2619
        %v2624 = vrsqrt.pop %v2474
        %v2625 = vmul.f32 %v2624, %v2474
        %v2626 = vmul.f32 %v2625, %v2624
        %v2627 = vmul.f32 0.5, %v2626
        %v2628 = vsub.f32 1.5, %v2627
        %v2629 = vmul.f32 %v2624, %v2628
        %vm2630 = vweird.f32 %v2474
        %vm2631 = vweird.f32 %v2624
        %vm2632 = vmor %vm2630, %vm2631
        %v2633 = vsel %vm2632, %v2624, %v2629
        %v2634 = vrsqrt.pop %v2475
        %v2635 = vmul.f32 %v2634, %v2475
        %v2636 = vmul.f32 %v2635, %v2634
        %v2637 = vmul.f32 0.5, %v2636
        %v2638 = vsub.f32 1.5, %v2637
        %v2639 = vmul.f32 %v2634, %v2638
        %vm2640 = vweird.f32 %v2475
        %vm2641 = vweird.f32 %v2634
        %vm2642 = vmor %vm2640, %vm2641
        %v2643 = vsel %vm2642, %v2634, %v2639
        %v2644 = vrsqrt.pop %v2476
        %v2645 = vmul.f32 %v2644, %v2476
        %v2646 = vmul.f32 %v2645, %v2644
        %v2647 = vmul.f32 0.5, %v2646
        %v2648 = vsub.f32 1.5, %v2647
        %v2649 = vmul.f32 %v2644, %v2648
        %vm2650 = vweird.f32 %v2476
        %vm2651 = vweird.f32 %v2644
        %vm2652 = vmor %vm2650, %vm2651
        %v2653 = vsel %vm2652, %v2644, %v2649
        %v2654 = vmul.f32 %v2478, %v2503
        %v2655 = vmul.f32 %v2479, %v2513
        %v2656 = vmul.f32 %v2480, %v2523
        %v2657 = vmul.f32 %v2481, %v2533
        %v2658 = vmul.f32 %v2482, %v2543
        %v2659 = vmul.f32 %v2483, %v2553
        %v2660 = vmul.f32 %v2484, %v2563
        %v2661 = vmul.f32 %v2485, %v2573
        %v2662 = vmul.f32 %v2486, %v2583
        %v2663 = vmul.f32 %v2487, %v2593
        %v2664 = vmul.f32 %v2488, %v2603
        %v2665 = vmul.f32 %v2489, %v2613
        %v2666 = vmul.f32 %v2490, %v2623
        %v2667 = vmul.f32 %v2491, %v2633
        %v2668 = vmul.f32 %v2492, %v2643
        %v2669 = vmul.f32 %v2493, %v2653
        %2670 = vxpose.xlu0.b32.start [1/16] %v2654, 128
        %2671 = vxpose.xlu0.b32.cont [2/16] %v2655, 128
        %2672 = vxpose.xlu0.b32.cont [3/16] %v2656, 128
        %2673 = vxpose.xlu0.b32.cont [4/16] %v2657, 128
        %2674 = vxpose.xlu0.b32.cont [5/16] %v2658, 128
        %2675 = vxpose.xlu0.b32.cont [6/16] %v2659, 128
        %2676 = vxpose.xlu0.b32.cont [7/16] %v2660, 128
        %2677 = vxpose.xlu0.b32.cont [8/16] %v2661, 128
        %2678 = vxpose.xlu0.b32.cont [9/16] %v2662, 128
        %2679 = vxpose.xlu0.b32.cont [10/16] %v2663, 128
        %2680 = vxpose.xlu0.b32.cont [11/16] %v2664, 128
        %2681 = vxpose.xlu0.b32.cont [12/16] %v2665, 128
        %2682 = vxpose.xlu0.b32.cont [13/16] %v2666, 128
        %2683 = vxpose.xlu0.b32.cont [14/16] %v2667, 128
        %2684 = vxpose.xlu0.b32.cont [15/16] %v2668, 128
        %2685 = vxpose.xlu0.b32.end [16/16] %v2669, 128
        %v2686 = vpop.trf.xlu0
        %v2687 = vpop.trf.xlu0
        %v2688 = vpop.trf.xlu0
        %v2689 = vpop.trf.xlu0
        %v2690 = vpop.trf.xlu0
        %v2691 = vpop.trf.xlu0
        %v2692 = vpop.trf.xlu0
        %v2693 = vpop.trf.xlu0
        %v2694 = vpop.trf.xlu0
        %v2695 = vpop.trf.xlu0
        %v2696 = vpop.trf.xlu0
        %v2697 = vpop.trf.xlu0
        %v2698 = vpop.trf.xlu0
        %v2699 = vpop.trf.xlu0
        %v2700 = vpop.trf.xlu0
        %v2701 = vpop.trf.xlu0
        %2702 = vst [vmem:[%s342] sm:$0x1] %v2686
        %s2703 = sand.u32 %s231, 1
        %s2704 = scalar_lea.sflag [#allocation4], %s2703
        %s2705 = sand.u32 %s231, 1
        %s2706 = scalar_lea.vmem [#allocation3], %s2705
        // Predicated region
        $region57: #{tpu_custom_call.1} parent=55 // pred_check
          %p2707 = pneg %p241
        $region58: #{tpu_custom_call.1} parent=55 // pred_check_branch
          %2709 = sbr.rel (%p2707) target = $region60
        $region59: #{tpu_custom_call.1} parent=55 // pred_region
          %2711 = vsyncadd %s2704, 0
          %s2712 = scalar_lea.hbm %s9, %s24
          %s2714 = sshll.u32 %s2706, 4
          %s2715 = int_to_ptr.vmem [resolvable:$true] %s2714
          %s2716 = sshll.u32 %s2712, 4
          %s2717 = int_to_ptr.hbm [resolvable:$true] %s2716
          %2719 = dma.vmem_to_hbm [thread:$0]  %s2715, 16, %s2717, %s2704
        $region60: #{tpu_custom_call.1} parent=55 // pred_fallthru
          _
      $region56: #{tpu_custom_call.1} parent=5 // pred_fallthru
        _
      %p2720 = scmp.le.s32.totalorder 2, %s19
      // Predicated region
      $region61: #{tpu_custom_call.1} parent=5 // pred_check
        %p2721 = pneg %p2720
      $region62: #{tpu_custom_call.1} parent=5 // pred_check_branch
        %2723 = sbr.rel (%p2721) target = $region64
      $region63: #{tpu_custom_call.1} parent=5 // pred_region
        %s2724 = ssub.s32 %s19, 2
        // Predicated region
        $region65: #{tpu_custom_call.1} parent=63 // pred_check
          %p2725 = pneg %p247
        $region66: #{tpu_custom_call.1} parent=63 // pred_check_branch
          %2727 = sbr.rel (%p2725) target = $region68
        $region67: #{tpu_custom_call.1} parent=63 // pred_region
          %s2728 = sand.u32 %s232, 1
          %s2729 = scalar_lea.sflag [#allocation4], %s2728
          %s2730 = sand.u32 %s232, 1
          %s2731 = scalar_lea.vmem [#allocation3], %s2730
          %2733 = dma.done %s2729, 16
        $region68: #{tpu_custom_call.1} parent=63 // pred_fallthru
          _
      $region64: #{tpu_custom_call.1} parent=5 // pred_fallthru
        _
    $region6: #{tpu_custom_call.1} parent=1 // loop_footer
      %s23 = sadd.s32 1, %s19
    $region7: #{tpu_custom_call.1} parent=1 // loop_footer_branch
      %18 = sbr.rel target = $region3
    $region8: #{tpu_custom_call.1} parent=1 // loop_exit
      _
    %2734 = vsyncpa [#allocation4], 1
    %s2735 = scalar_lea.sflag [#allocation4], 1
    %2736 = vsyncpa %s2735, 1

</llo_original>
